<compile_context>
chip_gen: v7x
topology: tpu7x:2x2x1
jax: 0.10.0
libtpu: 0.0.40
codegen_flags: <defaults>
</compile_context>

<pallas_src>
import jax
import jax.numpy as jnp
from jax import lax
from jax.experimental import pallas as pl
from jax.experimental.pallas import tpu as pltpu


def _head_kernel(h_ref, w1_ref, b1_ref, w2_ref, b2_ref, emb_ref, pool_ref):
    # h_ref:   (BT, D, N)   input dtype -- backbone feature slab, N = n1*n2
    # w1_ref:  (D, D)       bf16, pre-transposed to (in, out)   (fetched once)
    # b1_ref:  (1, D)       f32
    # w2_ref:  (D, OUT)     bf16, pre-transposed to (in, out)   (fetched once)
    # b2_ref:  (1, OUT)     f32
    # emb_ref: (BT, N, OUT) final dtype  (lane-dense, OUT = 768 = 6*128)
    # pool_ref:(BT, OUT)    final dtype
    bt = h_ref.shape[0]
    w1 = w1_ref[...]
    w2 = w2_ref[...]
    b1 = b1_ref[...]
    b2 = b2_ref[...]

    pool_rows = []
    for b in range(bt):                        # static unroll, bt <= 8
        hb = h_ref[b].astype(jnp.bfloat16)     # (D, N) MXU operand
        # Fused 'd n -> n d' transpose: contract over dim 0 (trans-A matmul).
        x = lax.dot_general(hb, w1, (((0,), (0,)), ((), ())),
                            preferred_element_type=jnp.float32)       # (N, D)
        x = jnp.maximum(x + b1, 0.0).astype(jnp.bfloat16)             # bias+ReLU in f32
        y = jnp.dot(x, w2, preferred_element_type=jnp.float32) + b2   # (N, OUT) f32
        emb_ref[b] = y.astype(emb_ref.dtype)
        pool_rows.append(jnp.mean(y, axis=0, keepdims=True))          # (1, OUT) f32
    pool_ref[...] = jnp.concatenate(pool_rows, axis=0).astype(pool_ref.dtype)


def prepare_head_params(w1, b1, w2, b2):
    """One-time conversion of nn.Linear params ((out, in), f32) to kernel layout.

    Transposes weights to (in, out) and casts to bf16 so no per-forward
    transpose/cast HBM pass sits on the critical path.  (int8 on v5e/v6e or
    fp8 on v7x would halve weight DMA / double MXU rate, but that is an
    accuracy trade-off rather than a drop-in change — kept at bf16 here.)
    """
    return (jnp.asarray(w1).T.astype(jnp.bfloat16),
            jnp.asarray(b1, jnp.float32).reshape(1, -1),
            jnp.asarray(w2).T.astype(jnp.bfloat16),
            jnp.asarray(b2, jnp.float32).reshape(1, -1))


def model_dense_head(dense_fea, w1t, b1, w2t, b2, *, batch_tile=8):
    """dense_fea: (B, D, n1, n2) NCHW feature map from the backbone.

    w1t: (D, D) bf16, b1: (1, D) f32     -- dense_l1 (see prepare_head_params)
    w2t: (D, OUT) bf16, b2: (1, OUT) f32 -- dense_l2
    Returns (out_emb (B, N, OUT), out_pool (B, OUT)) in dense_fea.dtype.
    """
    B, D, H, W = dense_fea.shape
    N = H * W
    OUT = w2t.shape[1]
    out_dtype = dense_fea.dtype

    # 'b d n1 n2 -> b d (n1 n2)': contiguous merge of the two minor dims — a
    # metadata-only reshape.  The '(b n) d' transpose itself happens inside the
    # kernel on the MXU, so no activation HBM pass remains in the wrapper.
    hb = dense_fea.reshape(B, D, N)

    # Batch tile: multiple of 8 (keeps the (bt, OUT) pool block sublane-legal
    # and gives >= 2 parallel grid steps on v7x for realistic B), or the whole
    # batch when it is small.  bt*N rows feed each pair of MXU matmuls.
    if B > batch_tile:
        if batch_tile % 8 != 0:
            raise ValueError("batch_tile must be a multiple of 8")
        bt = batch_tile
    else:
        bt = B
    grid = (pl.cdiv(B, bt),)

    b1r = b1.reshape(1, D).astype(jnp.float32)
    b2r = b2.reshape(1, OUT).astype(jnp.float32)

    out_emb, out_pool = pl.pallas_call(
        _head_kernel,
        out_shape=(jax.ShapeDtypeStruct((B, N, OUT), out_dtype),
                   jax.ShapeDtypeStruct((B, OUT), out_dtype)),
        grid=grid,
        in_specs=[
            pl.BlockSpec((bt, D, N), lambda i: (i, 0, 0)),    # activations
            pl.BlockSpec((D, D), lambda i: (0, 0)),           # W1^T (constant index -> fetched once)
            pl.BlockSpec((1, D), lambda i: (0, 0)),           # b1
            pl.BlockSpec((D, OUT), lambda i: (0, 0)),         # W2^T (constant index -> fetched once)
            pl.BlockSpec((1, OUT), lambda i: (0, 0)),         # b2
        ],
        out_specs=(
            pl.BlockSpec((bt, N, OUT), lambda i: (i, 0, 0)),  # out_emb (lane-dense)
            pl.BlockSpec((bt, OUT), lambda i: (i, 0)),        # out_pool
        ),
        compiler_params=pltpu.CompilerParams(
            dimension_semantics=("parallel",),   # batch tiles shard across TCs (v7x)
            vmem_limit_bytes=48 * 1024 * 1024,   # headroom for D=2048 weights on v7x
        ),
    )(hb, w1t, b1r, w2t, b2r)
    return out_emb, out_pool


def _reference_f32(dense_fea, w1, b1, w2, b2):
    """Full-f32 equivalent of the PyTorch module's head."""
    B, D, H, W = dense_fea.shape
    N = H * W
    h = jnp.transpose(dense_fea.reshape(B, D, N), (0, 2, 1)).reshape(B * N, D)
    x = jnp.maximum(h @ w1.T + b1, 0.0)
    y = x @ w2.T + b2
    emb = y.reshape(B, N, -1)
    return emb, jnp.mean(emb, axis=1)


def _reference_bf16(dense_fea, w1, b1, w2, b2):
    """Mirrors the kernel's numerics: bf16 MXU operands, f32 accumulation."""
    B, D, H, W = dense_fea.shape
    N = H * W
    h = jnp.transpose(dense_fea.reshape(B, D, N), (0, 2, 1)).reshape(B * N, D)
    h = h.astype(jnp.bfloat16)
    w1t = w1.T.astype(jnp.bfloat16)
    w2t = w2.T.astype(jnp.bfloat16)
    x = jnp.dot(h, w1t, preferred_element_type=jnp.float32) + b1
    x = jnp.maximum(x, 0.0).astype(jnp.bfloat16)
    y = jnp.dot(x, w2t, preferred_element_type=jnp.float32) + b2
    emb = y.reshape(B, N, -1)
    return emb, jnp.mean(emb, axis=1)


if __name__ == "__main__":
    # Small shapes consistent with the module's forward:
    #   backbone feature map (B, num_ftrs, n1, n2), head -> 768.
    B, D, H, W = 2, 256, 4, 4     # num_ftrs = 256 stand-in (1024 for densenet121)
    OUT = 768                     # fixed by dense_l2 in the module

    key = jax.random.PRNGKey(0)
    k_fea, k_w1, k_b1, k_w2, k_b2 = jax.random.split(key, 5)

    dense_fea = jax.random.normal(k_fea, (B, D, H, W), dtype=jnp.float32)
    # Deterministic parameter init (nn.Linear-style uniform fan-in scaling).
    w1 = jax.random.uniform(k_w1, (D, D), jnp.float32, -1.0, 1.0) / jnp.sqrt(D)
    b1 = jax.random.uniform(k_b1, (D,), jnp.float32, -1.0, 1.0) / jnp.sqrt(D)
    w2 = jax.random.uniform(k_w2, (OUT, D), jnp.float32, -1.0, 1.0) / jnp.sqrt(D)
    b2 = jax.random.uniform(k_b2, (OUT,), jnp.float32, -1.0, 1.0) / jnp.sqrt(D)

    # One-time weight layout/dtype conversion (off the forward critical path).
    params = prepare_head_params(w1, b1, w2, b2)

    out_emb, out_pool = model_dense_head(dense_fea, *params)
    jax.block_until_ready((out_emb, out_pool))

    assert out_emb.shape == (B, H * W, OUT)
    assert out_pool.shape == (B, OUT)

    # Tight check against a reference with identical bf16/f32 numerics.
    ref_emb_b, ref_pool_b = _reference_bf16(dense_fea, w1, b1, w2, b2)
    assert jnp.allclose(out_emb, ref_emb_b, atol=1e-3, rtol=1e-3)
    assert jnp.allclose(out_pool, ref_pool_b, atol=1e-3, rtol=1e-3)

    # Loose check against the full-f32 PyTorch-equivalent head (bf16 MXU
    # operands introduce ~1e-3 absolute error at these magnitudes).
    ref_emb, ref_pool = _reference_f32(dense_fea, w1, b1, w2, b2)
    assert jnp.allclose(out_emb, ref_emb, atol=2e-2, rtol=2e-2)
    assert jnp.allclose(out_pool, ref_pool, atol=2e-2, rtol=2e-2)

    print("KERNEL_OK")
</pallas_src>

<mosaic_0001>
module attributes {stable_mosaic.version = 11 : i64} {
  func.func @_head_kernel(%arg0: i32, %arg1: memref<2x256x16xf32, #tpu.memory_space<vmem>>, %arg2: memref<256x256xbf16, #tpu.memory_space<vmem>>, %arg3: memref<1x256xf32, #tpu.memory_space<vmem>>, %arg4: memref<256x768xbf16, #tpu.memory_space<vmem>>, %arg5: memref<1x768xf32, #tpu.memory_space<vmem>>, %arg6: memref<2x16x768xf32, #tpu.memory_space<vmem>>, %arg7: memref<2x768xf32, #tpu.memory_space<vmem>>) attributes {dimension_semantics = [#tpu.dimension_semantics<parallel>], iteration_bounds = array<i64: 1>, scalar_prefetch = 0 : i64, scratch_operands = 0 : i64, tpu.core_type = #tpu.core_type<tc>, window_params = [{transform_indices = @transform_0, window_bounds = array<i64: 2, 256, 16>}, {pipeline_mode = #tpu.pipeline_mode<synchronous>, transform_indices = @transform_1, window_bounds = array<i64: 256, 256>}, {pipeline_mode = #tpu.pipeline_mode<synchronous>, transform_indices = @transform_2, window_bounds = array<i64: 1, 256>}, {pipeline_mode = #tpu.pipeline_mode<synchronous>, transform_indices = @transform_3, window_bounds = array<i64: 256, 768>}, {pipeline_mode = #tpu.pipeline_mode<synchronous>, transform_indices = @transform_4, window_bounds = array<i64: 1, 768>}, {transform_indices = @transform_5, window_bounds = array<i64: 2, 16, 768>}, {transform_indices = @transform_6, window_bounds = array<i64: 2, 768>}]} {
    %c0 = arith.constant 0 : index
    %c0_0 = arith.constant 0 : index
    %0 = vector.load %arg2[%c0, %c0_0] : memref<256x256xbf16, #tpu.memory_space<vmem>>, vector<256x256xbf16>
    %c0_1 = arith.constant 0 : index
    %c0_2 = arith.constant 0 : index
    %1 = vector.load %arg4[%c0_1, %c0_2] : memref<256x768xbf16, #tpu.memory_space<vmem>>, vector<256x768xbf16>
    %c0_3 = arith.constant 0 : index
    %c0_4 = arith.constant 0 : index
    %2 = vector.load %arg3[%c0_3, %c0_4] : memref<1x256xf32, #tpu.memory_space<vmem>>, vector<1x256xf32>
    %c0_5 = arith.constant 0 : index
    %c0_6 = arith.constant 0 : index
    %3 = vector.load %arg5[%c0_5, %c0_6] : memref<1x768xf32, #tpu.memory_space<vmem>>, vector<1x768xf32>
    %c0_7 = arith.constant 0 : index
    %c0_8 = arith.constant 0 : index
    %c0_9 = arith.constant 0 : index
    %4 = vector.load %arg1[%c0_7, %c0_8, %c0_9] : memref<2x256x16xf32, #tpu.memory_space<vmem>>, vector<1x256x16xf32>
    %5 = vector.shape_cast %4 : vector<1x256x16xf32> to vector<256x16xf32>
    %6 = arith.truncf %5 : vector<256x16xf32> to vector<256x16xbf16>
    %cst = arith.constant dense<0.000000e+00> : vector<16x256xf32>
    %7 = tpu.matmul %6, %0, %cst {dimension_numbers = #tpu.dot_dimension_numbers<[0], [0], [1], [1], [0, 1, 1, 1], [], []>} : vector<256x16xbf16>, vector<256x256xbf16>, vector<16x256xf32> -> vector<16x256xf32>
    %8 = vector.broadcast %2 : vector<1x256xf32> to vector<16x256xf32>
    %9 = arith.addf %7, %8 : vector<16x256xf32>
    %cst_10 = arith.constant 0.000000e+00 : f32
    %10 = vector.broadcast %cst_10 : f32 to vector<16x256xf32>
    %11 = arith.maximumf %9, %10 : vector<16x256xf32>
    %12 = arith.truncf %11 : vector<16x256xf32> to vector<16x256xbf16>
    %cst_11 = arith.constant dense<0.000000e+00> : vector<16x768xf32>
    %13 = tpu.matmul %12, %1, %cst_11 {dimension_numbers = #tpu.dot_dimension_numbers<[1], [0], [0], [1], [0, 0, 1, 1], [], []>} : vector<16x256xbf16>, vector<256x768xbf16>, vector<16x768xf32> -> vector<16x768xf32>
    %14 = vector.broadcast %3 : vector<1x768xf32> to vector<16x768xf32>
    %15 = arith.addf %13, %14 : vector<16x768xf32>
    %c0_12 = arith.constant 0 : index
    %c0_13 = arith.constant 0 : index
    %c0_14 = arith.constant 0 : index
    %16 = vector.load %arg6[%c0_12, %c0_13, %c0_14] : memref<2x16x768xf32, #tpu.memory_space<vmem>>, vector<1x16x768xf32>
    %17 = vector.shape_cast %16 : vector<1x16x768xf32> to vector<16x768xf32>
    %18 = vector.shape_cast %15 : vector<16x768xf32> to vector<1x16x768xf32>
    tpu.vector_store %arg6[%c0_12, %c0_13, %c0_14], %18 {strides = array<i32>} : memref<2x16x768xf32, #tpu.memory_space<vmem>>, vector<1x16x768xf32>,
    %cst_15 = arith.constant dense<0.000000e+00> : vector<768xf32>
    %19 = vector.multi_reduction <add>, %15, %cst_15 [0] : vector<16x768xf32> to vector<768xf32>
    %20 = vector.shape_cast %19 : vector<768xf32> to vector<1x768xf32>
    %cst_16 = arith.constant 1.600000e+01 : f32
    %21 = vector.broadcast %cst_16 : f32 to vector<1x768xf32>
    %22 = arith.divf %20, %21 : vector<1x768xf32>
    %c1 = arith.constant 1 : index
    %c0_17 = arith.constant 0 : index
    %c0_18 = arith.constant 0 : index
    %23 = vector.load %arg1[%c1, %c0_17, %c0_18] : memref<2x256x16xf32, #tpu.memory_space<vmem>>, vector<1x256x16xf32>
    %24 = vector.shape_cast %23 : vector<1x256x16xf32> to vector<256x16xf32>
    %25 = arith.truncf %24 : vector<256x16xf32> to vector<256x16xbf16>
    %cst_19 = arith.constant dense<0.000000e+00> : vector<16x256xf32>
    %26 = tpu.matmul %25, %0, %cst_19 {dimension_numbers = #tpu.dot_dimension_numbers<[0], [0], [1], [1], [0, 1, 1, 1], [], []>} : vector<256x16xbf16>, vector<256x256xbf16>, vector<16x256xf32> -> vector<16x256xf32>
    %27 = vector.broadcast %2 : vector<1x256xf32> to vector<16x256xf32>
    %28 = arith.addf %26, %27 : vector<16x256xf32>
    %cst_20 = arith.constant 0.000000e+00 : f32
    %29 = vector.broadcast %cst_20 : f32 to vector<16x256xf32>
    %30 = arith.maximumf %28, %29 : vector<16x256xf32>
    %31 = arith.truncf %30 : vector<16x256xf32> to vector<16x256xbf16>
    %cst_21 = arith.constant dense<0.000000e+00> : vector<16x768xf32>
    %32 = tpu.matmul %31, %1, %cst_21 {dimension_numbers = #tpu.dot_dimension_numbers<[1], [0], [0], [1], [0, 0, 1, 1], [], []>} : vector<16x256xbf16>, vector<256x768xbf16>, vector<16x768xf32> -> vector<16x768xf32>
    %33 = vector.broadcast %3 : vector<1x768xf32> to vector<16x768xf32>
    %34 = arith.addf %32, %33 : vector<16x768xf32>
    %c1_22 = arith.constant 1 : index
    %c0_23 = arith.constant 0 : index
    %c0_24 = arith.constant 0 : index
    %35 = vector.load %arg6[%c1_22, %c0_23, %c0_24] : memref<2x16x768xf32, #tpu.memory_space<vmem>>, vector<1x16x768xf32>
    %36 = vector.shape_cast %35 : vector<1x16x768xf32> to vector<16x768xf32>
    %37 = vector.shape_cast %34 : vector<16x768xf32> to vector<1x16x768xf32>
    tpu.vector_store %arg6[%c1_22, %c0_23, %c0_24], %37 {strides = array<i32>} : memref<2x16x768xf32, #tpu.memory_space<vmem>>, vector<1x16x768xf32>,
    %cst_25 = arith.constant dense<0.000000e+00> : vector<768xf32>
    %38 = vector.multi_reduction <add>, %34, %cst_25 [0] : vector<16x768xf32> to vector<768xf32>
    %39 = vector.shape_cast %38 : vector<768xf32> to vector<1x768xf32>
    %cst_26 = arith.constant 1.600000e+01 : f32
    %40 = vector.broadcast %cst_26 : f32 to vector<1x768xf32>
    %41 = arith.divf %39, %40 : vector<1x768xf32>
    %42 = tpu.concatenate %22, %41 in 0 : vector<1x768xf32>, vector<1x768xf32> -> vector<2x768xf32>
    %c0_27 = arith.constant 0 : index
    %c0_28 = arith.constant 0 : index
    %43 = vector.load %arg7[%c0_27, %c0_28] : memref<2x768xf32, #tpu.memory_space<vmem>>, vector<2x768xf32>
    tpu.vector_store %arg7[%c0_27, %c0_28], %42 {strides = array<i32>} : memref<2x768xf32, #tpu.memory_space<vmem>>, vector<2x768xf32>,
    return
  }
  func.func @transform_0(%arg0: i32) -> (i32, i32, i32) {
    %c0_i32 = arith.constant 0 : i32
    %c0_i32_0 = arith.constant 0 : i32
    %c0_i32_1 = arith.constant 0 : i32
    return %arg0, %c0_i32, %c0_i32_0 : i32, i32, i32
  }
  func.func @transform_1(%arg0: i32) -> (i32, i32) {
    %c0_i32 = arith.constant 0 : i32
    %c0_i32_0 = arith.constant 0 : i32
    %c0_i32_1 = arith.constant 0 : i32
    return %c0_i32, %c0_i32_0 : i32, i32
  }
  func.func @transform_2(%arg0: i32) -> (i32, i32) {
    %c0_i32 = arith.constant 0 : i32
    %c0_i32_0 = arith.constant 0 : i32
    %c0_i32_1 = arith.constant 0 : i32
    return %c0_i32, %c0_i32_0 : i32, i32
  }
  func.func @transform_3(%arg0: i32) -> (i32, i32) {
    %c0_i32 = arith.constant 0 : i32
    %c0_i32_0 = arith.constant 0 : i32
    %c0_i32_1 = arith.constant 0 : i32
    return %c0_i32, %c0_i32_0 : i32, i32
  }
  func.func @transform_4(%arg0: i32) -> (i32, i32) {
    %c0_i32 = arith.constant 0 : i32
    %c0_i32_0 = arith.constant 0 : i32
    %c0_i32_1 = arith.constant 0 : i32
    return %c0_i32, %c0_i32_0 : i32, i32
  }
  func.func @transform_5(%arg0: i32) -> (i32, i32, i32) {
    %c0_i32 = arith.constant 0 : i32
    %c0_i32_0 = arith.constant 0 : i32
    %c0_i32_1 = arith.constant 0 : i32
    return %arg0, %c0_i32, %c0_i32_0 : i32, i32, i32
  }
  func.func @transform_6(%arg0: i32) -> (i32, i32) {
    %c0_i32 = arith.constant 0 : i32
    %c0_i32_0 = arith.constant 0 : i32
    return %arg0, %c0_i32 : i32, i32
  }
}

</mosaic_0001>

<llo_original>
// kernel: tpu_custom_call.1
$region0: #{tpu_custom_call.1}
  #allocation0 [shape = 'u32[]', space=smem, size = 0x4, offset = 0x4, fixed_abs, tag = 'smem constant byte address 0x4 - core index']
  #allocation1 [shape = 'u32[144,128]{1,0:T(1,128)}', space=vmem, size = 0x12000, scoped, tag = 'internal scratch']
  %s0 = inlined_call_operand.vmem [shape: f32[2,256,16], index: 0, kind: input, shape index: {}]
  %s1 = inlined_call_operand.vmem [shape: bf16[256,256], index: 1, kind: input, shape index: {}]
  %s2 = inlined_call_operand.vmem [shape: f32[1,256], index: 2, kind: input, shape index: {}]
  %s3 = inlined_call_operand.hbm [shape: bf16[256,768], index: 3, kind: input, shape index: {}]
  %s4 = inlined_call_operand.vmem [shape: f32[1,768], index: 4, kind: input, shape index: {}]
  %s5 = inlined_call_operand.hbm [shape: f32[2,16,768], index: 5, kind: output, shape index: {0}]
  %s6 = inlined_call_operand.hbm [shape: f32[2,768], index: 6, kind: output, shape index: {1}]
  %7 = xla_tuple %s5, %s6
  %s8 = sld [smem:[#allocation0]]
  $region42: #{tpu_custom_call.1} parent=0
    _
  %s10 = ssub.s32 1, %s8
  %s11 = scalar_select 0, %s10, %s8
  $region1: #{tpu_custom_call.1} parent=0
    #allocation2 [shape = 'u8[393216]{0}', space=vmem, size = 0x60000, scoped, tag = 'input window, operand 3, single buffered']
    #allocation3 [shape = 's32[1]{0}', space=sflag, size = 0x4, scoped, tag = 'scoped memory for tpu_custom_call.1']
    #allocation4 [shape = 's32[1]{0}', space=sflag, size = 0x4, scoped, tag = 'scoped memory for tpu_custom_call.1']
    #allocation5 [shape = 'u8[98304]{0}', space=vmem, size = 0x18000, scoped, tag = 'output window, operand 0, single buffered']
    #allocation6 [shape = 'u8[6144]{0}', space=vmem, size = 0x1800, scoped, tag = 'output window, operand 1, single buffered']
    #allocation7 [shape = 's32[1]{0}', space=sflag, size = 0x4, scoped, tag = 'scoped memory for tpu_custom_call.1']
    %12 = vsyncpa [#allocation3], 0
    %13 = vsyncpa [#allocation4], 0
    %14 = vsyncpa [#allocation7], 0
    // Predicated region
    $region2: #{tpu_custom_call.1} parent=1 // pred_check
      _
    $region3: #{tpu_custom_call.1} parent=1 // pred_check_branch
      %16 = sbr.rel (0) target = $region5
    $region4: #{tpu_custom_call.1} parent=1 // pred_region
      _
    $region5: #{tpu_custom_call.1} parent=1 // pred_fallthru
      _
    // Predicated region
    $region6: #{tpu_custom_call.1} parent=1 // pred_check
      _
    $region7: #{tpu_custom_call.1} parent=1 // pred_check_branch
      %18 = sbr.rel (0) target = $region9
    $region8: #{tpu_custom_call.1} parent=1 // pred_region
      _
    $region9: #{tpu_custom_call.1} parent=1 // pred_fallthru
      _
    // Predicated region
    $region10: #{tpu_custom_call.1} parent=1 // pred_check
      _
    $region11: #{tpu_custom_call.1} parent=1 // pred_check_branch
      %20 = sbr.rel (0) target = $region13
    $region12: #{tpu_custom_call.1} parent=1 // pred_region
      _
    $region13: #{tpu_custom_call.1} parent=1 // pred_fallthru
      _
    // Predicated region
    $region14: #{tpu_custom_call.1} parent=1 // pred_check
      _
    $region15: #{tpu_custom_call.1} parent=1 // pred_check_branch
      %22 = sbr.rel (0) target = $region17
    $region16: #{tpu_custom_call.1} parent=1 // pred_region
      %s24 = ssub.s32 12288, 12288
      %25 = vsyncadd [#allocation3], %s24
      %s26 = sshll.u32 [#allocation2], 4
      %s27 = int_to_ptr.vmem [resolvable:$true] %s26
      %32 = dma.hbm_to_vmem [thread:$0]  %s3, 12288, %s27, [#allocation3], 384, 384, 24
    $region17: #{tpu_custom_call.1} parent=1 // pred_fallthru
      _
    // Predicated region
    $region18: #{tpu_custom_call.1} parent=1 // pred_check
      _
    $region19: #{tpu_custom_call.1} parent=1 // pred_check_branch
      %34 = sbr.rel (0) target = $region21
    $region20: #{tpu_custom_call.1} parent=1 // pred_region
      _
    $region21: #{tpu_custom_call.1} parent=1 // pred_fallthru
      _
    // Predicated region
    $region22: #{tpu_custom_call.1} parent=1 // pred_check
      _
    $region23: #{tpu_custom_call.1} parent=1 // pred_check_branch
      %36 = sbr.rel (0) target = $region25
    $region24: #{tpu_custom_call.1} parent=1 // pred_region
      %37 = dma.done [#allocation3], 12288
    $region25: #{tpu_custom_call.1} parent=1 // pred_fallthru
      _
    %v38 = vld [vmem:[%s1] sm:$0xff]
    %v39 = vld [vmem:[%s1 + $0x8] sm:$0xff]
    %v40 = vld [vmem:[%s1 + $0x10] sm:$0xff]
    %v41 = vld [vmem:[%s1 + $0x18] sm:$0xff]
    %v42 = vld [vmem:[%s1 + $0x20] sm:$0xff]
    %v43 = vld [vmem:[%s1 + $0x28] sm:$0xff]
    %v44 = vld [vmem:[%s1 + $0x30] sm:$0xff]
    %v45 = vld [vmem:[%s1 + $0x38] sm:$0xff]
    %v46 = vld [vmem:[%s1 + $0x40] sm:$0xff]
    %v47 = vld [vmem:[%s1 + $0x48] sm:$0xff]
    %v48 = vld [vmem:[%s1 + $0x50] sm:$0xff]
    %v49 = vld [vmem:[%s1 + $0x58] sm:$0xff]
    %v50 = vld [vmem:[%s1 + $0x60] sm:$0xff]
    %v51 = vld [vmem:[%s1 + $0x68] sm:$0xff]
    %v52 = vld [vmem:[%s1 + $0x70] sm:$0xff]
    %v53 = vld [vmem:[%s1 + $0x78] sm:$0xff]
    %v54 = vld [vmem:[%s1 + $0x80] sm:$0xff]
    %v55 = vld [vmem:[%s1 + $0x88] sm:$0xff]
    %v56 = vld [vmem:[%s1 + $0x90] sm:$0xff]
    %v57 = vld [vmem:[%s1 + $0x98] sm:$0xff]
    %v58 = vld [vmem:[%s1 + $0xa0] sm:$0xff]
    %v59 = vld [vmem:[%s1 + $0xa8] sm:$0xff]
    %v60 = vld [vmem:[%s1 + $0xb0] sm:$0xff]
    %v61 = vld [vmem:[%s1 + $0xb8] sm:$0xff]
    %v62 = vld [vmem:[%s1 + $0xc0] sm:$0xff]
    %v63 = vld [vmem:[%s1 + $0xc8] sm:$0xff]
    %v64 = vld [vmem:[%s1 + $0xd0] sm:$0xff]
    %v65 = vld [vmem:[%s1 + $0xd8] sm:$0xff]
    %v66 = vld [vmem:[%s1 + $0xe0] sm:$0xff]
    %v67 = vld [vmem:[%s1 + $0xe8] sm:$0xff]
    %v68 = vld [vmem:[%s1 + $0xf0] sm:$0xff]
    %v69 = vld [vmem:[%s1 + $0xf8] sm:$0xff]
    %v70 = vld [vmem:[#allocation2] sm:$0xff]
    %v71 = vld [vmem:[#allocation2 + $0x8] sm:$0xff]
    %v72 = vld [vmem:[#allocation2 + $0x10] sm:$0xff]
    %v73 = vld [vmem:[#allocation2 + $0x18] sm:$0xff]
    %v74 = vld [vmem:[#allocation2 + $0x20] sm:$0xff]
    %v75 = vld [vmem:[#allocation2 + $0x28] sm:$0xff]
    %v76 = vld [vmem:[#allocation2 + $0x30] sm:$0xff]
    %v77 = vld [vmem:[#allocation2 + $0x38] sm:$0xff]
    %v78 = vld [vmem:[#allocation2 + $0x40] sm:$0xff]
    %v79 = vld [vmem:[#allocation2 + $0x48] sm:$0xff]
    %v80 = vld [vmem:[#allocation2 + $0x50] sm:$0xff]
    %v81 = vld [vmem:[#allocation2 + $0x58] sm:$0xff]
    %v82 = vld [vmem:[#allocation2 + $0x60] sm:$0xff]
    %v83 = vld [vmem:[#allocation2 + $0x68] sm:$0xff]
    %v84 = vld [vmem:[#allocation2 + $0x70] sm:$0xff]
    %v85 = vld [vmem:[#allocation2 + $0x78] sm:$0xff]
    %v86 = vld [vmem:[#allocation2 + $0x80] sm:$0xff]
    %v87 = vld [vmem:[#allocation2 + $0x88] sm:$0xff]
    %v88 = vld [vmem:[#allocation2 + $0x90] sm:$0xff]
    %v89 = vld [vmem:[#allocation2 + $0x98] sm:$0xff]
    %v90 = vld [vmem:[#allocation2 + $0xa0] sm:$0xff]
    %v91 = vld [vmem:[#allocation2 + $0xa8] sm:$0xff]
    %v92 = vld [vmem:[#allocation2 + $0xb0] sm:$0xff]
    %v93 = vld [vmem:[#allocation2 + $0xb8] sm:$0xff]
    %v94 = vld [vmem:[#allocation2 + $0xc0] sm:$0xff]
    %v95 = vld [vmem:[#allocation2 + $0xc8] sm:$0xff]
    %v96 = vld [vmem:[#allocation2 + $0xd0] sm:$0xff]
    %v97 = vld [vmem:[#allocation2 + $0xd8] sm:$0xff]
    %v98 = vld [vmem:[#allocation2 + $0xe0] sm:$0xff]
    %v99 = vld [vmem:[#allocation2 + $0xe8] sm:$0xff]
    %v100 = vld [vmem:[#allocation2 + $0xf0] sm:$0xff]
    %v101 = vld [vmem:[#allocation2 + $0xf8] sm:$0xff]
    %v102 = vld [vmem:[#allocation2 + $0x100] sm:$0xff]
    %v103 = vld [vmem:[#allocation2 + $0x108] sm:$0xff]
    %v104 = vld [vmem:[#allocation2 + $0x110] sm:$0xff]
    %v105 = vld [vmem:[#allocation2 + $0x118] sm:$0xff]
    %v106 = vld [vmem:[#allocation2 + $0x120] sm:$0xff]
    %v107 = vld [vmem:[#allocation2 + $0x128] sm:$0xff]
    %v108 = vld [vmem:[#allocation2 + $0x130] sm:$0xff]
    %v109 = vld [vmem:[#allocation2 + $0x138] sm:$0xff]
    %v110 = vld [vmem:[#allocation2 + $0x140] sm:$0xff]
    %v111 = vld [vmem:[#allocation2 + $0x148] sm:$0xff]
    %v112 = vld [vmem:[#allocation2 + $0x150] sm:$0xff]
    %v113 = vld [vmem:[#allocation2 + $0x158] sm:$0xff]
    %v114 = vld [vmem:[#allocation2 + $0x160] sm:$0xff]
    %v115 = vld [vmem:[#allocation2 + $0x168] sm:$0xff]
    %v116 = vld [vmem:[#allocation2 + $0x170] sm:$0xff]
    %v117 = vld [vmem:[#allocation2 + $0x178] sm:$0xff]
    %v118 = vld [vmem:[#allocation2 + $0x180] sm:$0xff]
    %v119 = vld [vmem:[#allocation2 + $0x188] sm:$0xff]
    %v120 = vld [vmem:[#allocation2 + $0x190] sm:$0xff]
    %v121 = vld [vmem:[#allocation2 + $0x198] sm:$0xff]
    %v122 = vld [vmem:[#allocation2 + $0x1a0] sm:$0xff]
    %v123 = vld [vmem:[#allocation2 + $0x1a8] sm:$0xff]
    %v124 = vld [vmem:[#allocation2 + $0x1b0] sm:$0xff]
    %v125 = vld [vmem:[#allocation2 + $0x1b8] sm:$0xff]
    %v126 = vld [vmem:[#allocation2 + $0x1c0] sm:$0xff]
    %v127 = vld [vmem:[#allocation2 + $0x1c8] sm:$0xff]
    %v128 = vld [vmem:[#allocation2 + $0x1d0] sm:$0xff]
    %v129 = vld [vmem:[#allocation2 + $0x1d8] sm:$0xff]
    %v130 = vld [vmem:[#allocation2 + $0x1e0] sm:$0xff]
    %v131 = vld [vmem:[#allocation2 + $0x1e8] sm:$0xff]
    %v132 = vld [vmem:[#allocation2 + $0x1f0] sm:$0xff]
    %v133 = vld [vmem:[#allocation2 + $0x1f8] sm:$0xff]
    %v134 = vld [vmem:[#allocation2 + $0x200] sm:$0xff]
    %v135 = vld [vmem:[#allocation2 + $0x208] sm:$0xff]
    %v136 = vld [vmem:[#allocation2 + $0x210] sm:$0xff]
    %v137 = vld [vmem:[#allocation2 + $0x218] sm:$0xff]
    %v138 = vld [vmem:[#allocation2 + $0x220] sm:$0xff]
    %v139 = vld [vmem:[#allocation2 + $0x228] sm:$0xff]
    %v140 = vld [vmem:[#allocation2 + $0x230] sm:$0xff]
    %v141 = vld [vmem:[#allocation2 + $0x238] sm:$0xff]
    %v142 = vld [vmem:[#allocation2 + $0x240] sm:$0xff]
    %v143 = vld [vmem:[#allocation2 + $0x248] sm:$0xff]
    %v144 = vld [vmem:[#allocation2 + $0x250] sm:$0xff]
    %v145 = vld [vmem:[#allocation2 + $0x258] sm:$0xff]
    %v146 = vld [vmem:[#allocation2 + $0x260] sm:$0xff]
    %v147 = vld [vmem:[#allocation2 + $0x268] sm:$0xff]
    %v148 = vld [vmem:[#allocation2 + $0x270] sm:$0xff]
    %v149 = vld [vmem:[#allocation2 + $0x278] sm:$0xff]
    %v150 = vld [vmem:[#allocation2 + $0x280] sm:$0xff]
    %v151 = vld [vmem:[#allocation2 + $0x288] sm:$0xff]
    %v152 = vld [vmem:[#allocation2 + $0x290] sm:$0xff]
    %v153 = vld [vmem:[#allocation2 + $0x298] sm:$0xff]
    %v154 = vld [vmem:[#allocation2 + $0x2a0] sm:$0xff]
    %v155 = vld [vmem:[#allocation2 + $0x2a8] sm:$0xff]
    %v156 = vld [vmem:[#allocation2 + $0x2b0] sm:$0xff]
    %v157 = vld [vmem:[#allocation2 + $0x2b8] sm:$0xff]
    %v158 = vld [vmem:[#allocation2 + $0x2c0] sm:$0xff]
    %v159 = vld [vmem:[#allocation2 + $0x2c8] sm:$0xff]
    %v160 = vld [vmem:[#allocation2 + $0x2d0] sm:$0xff]
    %v161 = vld [vmem:[#allocation2 + $0x2d8] sm:$0xff]
    %v162 = vld [vmem:[#allocation2 + $0x2e0] sm:$0xff]
    %v163 = vld [vmem:[#allocation2 + $0x2e8] sm:$0xff]
    %v164 = vld [vmem:[#allocation2 + $0x2f0] sm:$0xff]
    %v165 = vld [vmem:[#allocation2 + $0x2f8] sm:$0xff]
    %v166 = vld [vmem:[%s2] sm:$0x3]
    %v167 = vld [vmem:[%s4] sm:$0x3f]
    %v168 = vld [vmem:[%s0] sm:$0xff]
    %v169 = vld [vmem:[%s0 + $0x8] sm:$0xff]
    %v170 = vld [vmem:[%s0 + $0x10] sm:$0xff]
    %v171 = vld [vmem:[%s0 + $0x18] sm:$0xff]
    %v172 = vld [vmem:[%s0 + $0x20] sm:$0xff]
    %v173 = vld [vmem:[%s0 + $0x28] sm:$0xff]
    %v174 = vld [vmem:[%s0 + $0x30] sm:$0xff]
    %v175 = vld [vmem:[%s0 + $0x38] sm:$0xff]
    %v176 = vld [vmem:[%s0 + $0x40] sm:$0xff]
    %v177 = vld [vmem:[%s0 + $0x48] sm:$0xff]
    %v178 = vld [vmem:[%s0 + $0x50] sm:$0xff]
    %v179 = vld [vmem:[%s0 + $0x58] sm:$0xff]
    %v180 = vld [vmem:[%s0 + $0x60] sm:$0xff]
    %v181 = vld [vmem:[%s0 + $0x68] sm:$0xff]
    %v182 = vld [vmem:[%s0 + $0x70] sm:$0xff]
    %v183 = vld [vmem:[%s0 + $0x78] sm:$0xff]
    %v184 = vld [vmem:[%s0 + $0x80] sm:$0xff]
    %v185 = vld [vmem:[%s0 + $0x88] sm:$0xff]
    %v186 = vld [vmem:[%s0 + $0x90] sm:$0xff]
    %v187 = vld [vmem:[%s0 + $0x98] sm:$0xff]
    %v188 = vld [vmem:[%s0 + $0xa0] sm:$0xff]
    %v189 = vld [vmem:[%s0 + $0xa8] sm:$0xff]
    %v190 = vld [vmem:[%s0 + $0xb0] sm:$0xff]
    %v191 = vld [vmem:[%s0 + $0xb8] sm:$0xff]
    %v192 = vld [vmem:[%s0 + $0xc0] sm:$0xff]
    %v193 = vld [vmem:[%s0 + $0xc8] sm:$0xff]
    %v194 = vld [vmem:[%s0 + $0xd0] sm:$0xff]
    %v195 = vld [vmem:[%s0 + $0xd8] sm:$0xff]
    %v196 = vld [vmem:[%s0 + $0xe0] sm:$0xff]
    %v197 = vld [vmem:[%s0 + $0xe8] sm:$0xff]
    %v198 = vld [vmem:[%s0 + $0xf0] sm:$0xff]
    %v199 = vld [vmem:[%s0 + $0xf8] sm:$0xff]
    %v200 = vpack.c.bf16 %v169, %v168
    %v201 = vpack.c.bf16 %v171, %v170
    %v202 = vpack.c.bf16 %v173, %v172
    %v203 = vpack.c.bf16 %v175, %v174
    %v204 = vpack.c.bf16 %v177, %v176
    %v205 = vpack.c.bf16 %v179, %v178
    %v206 = vpack.c.bf16 %v181, %v180
    %v207 = vpack.c.bf16 %v183, %v182
    %v208 = vpack.c.bf16 %v185, %v184
    %v209 = vpack.c.bf16 %v187, %v186
    %v210 = vpack.c.bf16 %v189, %v188
    %v211 = vpack.c.bf16 %v191, %v190
    %v212 = vpack.c.bf16 %v193, %v192
    %v213 = vpack.c.bf16 %v195, %v194
    %v214 = vpack.c.bf16 %v197, %v196
    %v215 = vpack.c.bf16 %v199, %v198
    %v217 = vlaneseq
    %v218 = vshrl.u32 %v217, 7
    %v219 = vsub.s32 0, %v218
    %v220 = vrot.slane %v166, %v219
    %v221 = vlaneseq
    %v222 = vshrl.u32 %v221, 7
    %v223 = vsub.s32 1, %v222
    %v224 = vrot.slane %v166, %v223
    %227 = vxpose.xlu0.c.b16.start [1/8] %v200, 128
    %228 = vxpose.xlu0.c.b16.cont [2/8] %v201, 128
    %229 = vxpose.xlu0.c.b16.cont [3/8] %v202, 128
    %230 = vxpose.xlu0.c.b16.cont [4/8] %v203, 128
    %231 = vxpose.xlu0.c.b16.cont [5/8] %v204, 128
    %232 = vxpose.xlu0.c.b16.cont [6/8] %v205, 128
    %233 = vxpose.xlu0.c.b16.cont [7/8] %v206, 128
    %234 = vxpose.xlu0.c.b16.end [8/8] %v207, 128
    %v235 = vpop.trf.xlu0
    %v236 = vpop.trf.xlu0
    %v237 = vpop.trf.xlu0
    %v238 = vpop.trf.xlu0
    %v239 = vpop.trf.xlu0
    %v240 = vpop.trf.xlu0
    %v241 = vpop.trf.xlu0
    %v242 = vpop.trf.xlu0
    %243 = vxpose.xlu0.c.b16.start [1/8] %v208, 128
    %244 = vxpose.xlu0.c.b16.cont [2/8] %v209, 128
    %245 = vxpose.xlu0.c.b16.cont [3/8] %v210, 128
    %246 = vxpose.xlu0.c.b16.cont [4/8] %v211, 128
    %247 = vxpose.xlu0.c.b16.cont [5/8] %v212, 128
    %248 = vxpose.xlu0.c.b16.cont [6/8] %v213, 128
    %249 = vxpose.xlu0.c.b16.cont [7/8] %v214, 128
    %250 = vxpose.xlu0.c.b16.end [8/8] %v215, 128
    %v251 = vpop.trf.xlu0
    %v252 = vpop.trf.xlu0
    %v253 = vpop.trf.xlu0
    %v254 = vpop.trf.xlu0
    %v255 = vpop.trf.xlu0
    %v256 = vpop.trf.xlu0
    %v257 = vpop.trf.xlu0
    %v258 = vpop.trf.xlu0
    %v291 = vunpack.c.l.b16 %v38
    %v292 = vunpack.c.h.b16 %v38
    %v293 = vunpack.c.l.b16 %v39
    %v294 = vunpack.c.h.b16 %v39
    %v295 = vunpack.c.l.b16 %v40
    %v296 = vunpack.c.h.b16 %v40
    %v297 = vunpack.c.l.b16 %v41
    %v298 = vunpack.c.h.b16 %v41
    %v299 = vunpack.c.l.b16 %v42
    %v300 = vunpack.c.h.b16 %v42
    %v301 = vunpack.c.l.b16 %v43
    %v302 = vunpack.c.h.b16 %v43
    %v303 = vunpack.c.l.b16 %v44
    %v304 = vunpack.c.h.b16 %v44
    %v305 = vunpack.c.l.b16 %v45
    %v306 = vunpack.c.h.b16 %v45
    %v307 = vunpack.c.l.b16 %v46
    %v308 = vunpack.c.h.b16 %v46
    %v309 = vunpack.c.l.b16 %v47
    %v310 = vunpack.c.h.b16 %v47
    %v311 = vunpack.c.l.b16 %v48
    %v312 = vunpack.c.h.b16 %v48
    %v313 = vunpack.c.l.b16 %v49
    %v314 = vunpack.c.h.b16 %v49
    %v315 = vunpack.c.l.b16 %v50
    %v316 = vunpack.c.h.b16 %v50
    %v317 = vunpack.c.l.b16 %v51
    %v318 = vunpack.c.h.b16 %v51
    %v319 = vunpack.c.l.b16 %v52
    %v320 = vunpack.c.h.b16 %v52
    %v321 = vunpack.c.l.b16 %v53
    %v322 = vunpack.c.h.b16 %v53
    %v323 = vunpack.c.l.b16 %v54
    %v324 = vunpack.c.h.b16 %v54
    %v325 = vunpack.c.l.b16 %v55
    %v326 = vunpack.c.h.b16 %v55
    %v327 = vunpack.c.l.b16 %v56
    %v328 = vunpack.c.h.b16 %v56
    %v329 = vunpack.c.l.b16 %v57
    %v330 = vunpack.c.h.b16 %v57
    %v331 = vunpack.c.l.b16 %v58
    %v332 = vunpack.c.h.b16 %v58
    %v333 = vunpack.c.l.b16 %v59
    %v334 = vunpack.c.h.b16 %v59
    %v335 = vunpack.c.l.b16 %v60
    %v336 = vunpack.c.h.b16 %v60
    %v337 = vunpack.c.l.b16 %v61
    %v338 = vunpack.c.h.b16 %v61
    %v339 = vunpack.c.l.b16 %v62
    %v340 = vunpack.c.h.b16 %v62
    %v341 = vunpack.c.l.b16 %v63
    %v342 = vunpack.c.h.b16 %v63
    %v343 = vunpack.c.l.b16 %v64
    %v344 = vunpack.c.h.b16 %v64
    %v345 = vunpack.c.l.b16 %v65
    %v346 = vunpack.c.h.b16 %v65
    %v347 = vunpack.c.l.b16 %v66
    %v348 = vunpack.c.h.b16 %v66
    %v349 = vunpack.c.l.b16 %v67
    %v350 = vunpack.c.h.b16 %v67
    %v351 = vunpack.c.l.b16 %v68
    %v352 = vunpack.c.h.b16 %v68
    %v353 = vunpack.c.l.b16 %v69
    %v354 = vunpack.c.h.b16 %v69
    %v355 = vpack.c.b16 %v293, %v291
    %v356 = vpack.c.b16 %v294, %v292
    %v357 = vpack.c.b16 %v297, %v295
    %v358 = vpack.c.b16 %v298, %v296
    %v359 = vpack.c.b16 %v301, %v299
    %v360 = vpack.c.b16 %v302, %v300
    %v361 = vpack.c.b16 %v305, %v303
    %v362 = vpack.c.b16 %v306, %v304
    %v363 = vpack.c.b16 %v309, %v307
    %v364 = vpack.c.b16 %v310, %v308
    %v365 = vpack.c.b16 %v313, %v311
    %v366 = vpack.c.b16 %v314, %v312
    %v367 = vpack.c.b16 %v317, %v315
    %v368 = vpack.c.b16 %v318, %v316
    %v369 = vpack.c.b16 %v321, %v319
    %v370 = vpack.c.b16 %v322, %v320
    %v371 = vpack.c.b16 %v325, %v323
    %v372 = vpack.c.b16 %v326, %v324
    %v373 = vpack.c.b16 %v329, %v327
    %v374 = vpack.c.b16 %v330, %v328
    %v375 = vpack.c.b16 %v333, %v331
    %v376 = vpack.c.b16 %v334, %v332
    %v377 = vpack.c.b16 %v337, %v335
    %v378 = vpack.c.b16 %v338, %v336
    %v379 = vpack.c.b16 %v341, %v339
    %v380 = vpack.c.b16 %v342, %v340
    %v381 = vpack.c.b16 %v345, %v343
    %v382 = vpack.c.b16 %v346, %v344
    %v383 = vpack.c.b16 %v349, %v347
    %v384 = vpack.c.b16 %v350, %v348
    %v385 = vpack.c.b16 %v353, %v351
    %v386 = vpack.c.b16 %v354, %v352
    %419 = vmatprep.subr.bf16.mxu0 %v356
    %420 = vmatpush1.bf16.msra.mxu0 %v355
    %421 = vmatprep.subr.bf16.mxu0 %v358
    %422 = vmatpush1.bf16.msra.mxu0 %v357
    %423 = vmatprep.subr.bf16.mxu0 %v360
    %424 = vmatpush1.bf16.msra.mxu0 %v359
    %425 = vmatprep.subr.bf16.mxu0 %v362
    %426 = vmatpush1.bf16.msra.mxu0 %v361
    %427 = vmatprep.subr.bf16.mxu0 %v364
    %428 = vmatpush1.bf16.msra.mxu0 %v363
    %429 = vmatprep.subr.bf16.mxu0 %v366
    %430 = vmatpush1.bf16.msra.mxu0 %v365
    %431 = vmatprep.subr.bf16.mxu0 %v368
    %432 = vmatpush1.bf16.msra.mxu0 %v367
    %433 = vmatprep.subr.bf16.mxu0 %v370
    %434 = vmatpush1.bf16.msra.mxu0 %v369
    %435 = vmatprep.subr.bf16.mxu0 %v372
    %436 = vmatpush1.bf16.msra.mxu0 %v371
    %437 = vmatprep.subr.bf16.mxu0 %v374
    %438 = vmatpush1.bf16.msra.mxu0 %v373
    %439 = vmatprep.subr.bf16.mxu0 %v376
    %440 = vmatpush1.bf16.msra.mxu0 %v375
    %441 = vmatprep.subr.bf16.mxu0 %v378
    %442 = vmatpush1.bf16.msra.mxu0 %v377
    %443 = vmatprep.subr.bf16.mxu0 %v380
    %444 = vmatpush1.bf16.msra.mxu0 %v379
    %445 = vmatprep.subr.bf16.mxu0 %v382
    %446 = vmatpush1.bf16.msra.mxu0 %v381
    %447 = vmatprep.subr.bf16.mxu0 %v384
    %448 = vmatpush1.bf16.msra.mxu0 %v383
    %449 = vmatprep.subr.bf16.mxu0 %v386
    %450 = vmatpush1.bf16.msra.mxu0 %v385
    %451 = vmatprep.mubr.bf16.mxu0 %v251
    %452 = vmatmul.mubr.bf16.gmra.mrb[0].mxu0 %v235
    %v453 = vpop.f32.mrb[0].mxu0
    %v454 = vadd.f32 %v220, %v453
    %v455 = vpop.f32.mrb[0].mxu0
    %v456 = vadd.f32 %v224, %v455
    %v457 = vpop.f32.mrb[0].mxu0
    %v458 = vadd.f32 %v220, %v457
    %v459 = vpop.f32.mrb[0].mxu0
    %v460 = vadd.f32 %v224, %v459
    %461 = vdwg.mxu0
    %v462 = vmax.f32 %v454, 0.0
    %v463 = vmax.f32 %v456, 0.0
    %v464 = vmax.f32 %v458, 0.0
    %v465 = vmax.f32 %v460, 0.0
    %v466 = vpack.c.bf16 %v464, %v462
    %v467 = vpack.c.bf16 %v465, %v463
    %v469 = vlaneseq
    %v470 = vshrl.u32 %v469, 7
    %v471 = vsub.s32 0, %v470
    %v472 = vrot.slane %v167, %v471
    %v473 = vlaneseq
    %v474 = vshrl.u32 %v473, 7
    %v475 = vsub.s32 1, %v474
    %v476 = vrot.slane %v167, %v475
    %v477 = vlaneseq
    %v478 = vshrl.u32 %v477, 7
    %v479 = vsub.s32 2, %v478
    %v480 = vrot.slane %v167, %v479
    %v481 = vlaneseq
    %v482 = vshrl.u32 %v481, 7
    %v483 = vsub.s32 3, %v482
    %v484 = vrot.slane %v167, %v483
    %v485 = vlaneseq
    %v486 = vshrl.u32 %v485, 7
    %v487 = vsub.s32 4, %v486
    %v488 = vrot.slane %v167, %v487
    %v489 = vlaneseq
    %v490 = vshrl.u32 %v489, 7
    %v491 = vsub.s32 5, %v490
    %v492 = vrot.slane %v167, %v491
    %v595 = vunpack.c.l.b16 %v70
    %v596 = vunpack.c.h.b16 %v70
    %v597 = vunpack.c.l.b16 %v71
    %v598 = vunpack.c.h.b16 %v71
    %v599 = vunpack.c.l.b16 %v72
    %v600 = vunpack.c.h.b16 %v72
    %v601 = vunpack.c.l.b16 %v73
    %v602 = vunpack.c.h.b16 %v73
    %v603 = vunpack.c.l.b16 %v74
    %v604 = vunpack.c.h.b16 %v74
    %v605 = vunpack.c.l.b16 %v75
    %v606 = vunpack.c.h.b16 %v75
    %v607 = vunpack.c.l.b16 %v76
    %v608 = vunpack.c.h.b16 %v76
    %v609 = vunpack.c.l.b16 %v77
    %v610 = vunpack.c.h.b16 %v77
    %v611 = vunpack.c.l.b16 %v78
    %v612 = vunpack.c.h.b16 %v78
    %v613 = vunpack.c.l.b16 %v79
    %v614 = vunpack.c.h.b16 %v79
    %v615 = vunpack.c.l.b16 %v80
    %v616 = vunpack.c.h.b16 %v80
    %v617 = vunpack.c.l.b16 %v81
    %v618 = vunpack.c.h.b16 %v81
    %v619 = vunpack.c.l.b16 %v82
    %v620 = vunpack.c.h.b16 %v82
    %v621 = vunpack.c.l.b16 %v83
    %v622 = vunpack.c.h.b16 %v83
    %v623 = vunpack.c.l.b16 %v84
    %v624 = vunpack.c.h.b16 %v84
    %v625 = vunpack.c.l.b16 %v85
    %v626 = vunpack.c.h.b16 %v85
    %v627 = vunpack.c.l.b16 %v86
    %v628 = vunpack.c.h.b16 %v86
    %v629 = vunpack.c.l.b16 %v87
    %v630 = vunpack.c.h.b16 %v87
    %v631 = vunpack.c.l.b16 %v88
    %v632 = vunpack.c.h.b16 %v88
    %v633 = vunpack.c.l.b16 %v89
    %v634 = vunpack.c.h.b16 %v89
    %v635 = vunpack.c.l.b16 %v90
    %v636 = vunpack.c.h.b16 %v90
    %v637 = vunpack.c.l.b16 %v91
    %v638 = vunpack.c.h.b16 %v91
    %v639 = vunpack.c.l.b16 %v92
    %v640 = vunpack.c.h.b16 %v92
    %v641 = vunpack.c.l.b16 %v93
    %v642 = vunpack.c.h.b16 %v93
    %v643 = vunpack.c.l.b16 %v94
    %v644 = vunpack.c.h.b16 %v94
    %v645 = vunpack.c.l.b16 %v95
    %v646 = vunpack.c.h.b16 %v95
    %v647 = vunpack.c.l.b16 %v96
    %v648 = vunpack.c.h.b16 %v96
    %v649 = vunpack.c.l.b16 %v97
    %v650 = vunpack.c.h.b16 %v97
    %v651 = vunpack.c.l.b16 %v98
    %v652 = vunpack.c.h.b16 %v98
    %v653 = vunpack.c.l.b16 %v99
    %v654 = vunpack.c.h.b16 %v99
    %v655 = vunpack.c.l.b16 %v100
    %v656 = vunpack.c.h.b16 %v100
    %v657 = vunpack.c.l.b16 %v101
    %v658 = vunpack.c.h.b16 %v101
    %v659 = vunpack.c.l.b16 %v102
    %v660 = vunpack.c.h.b16 %v102
    %v661 = vunpack.c.l.b16 %v103
    %v662 = vunpack.c.h.b16 %v103
    %v663 = vunpack.c.l.b16 %v104
    %v664 = vunpack.c.h.b16 %v104
    %v665 = vunpack.c.l.b16 %v105
    %v666 = vunpack.c.h.b16 %v105
    %v667 = vunpack.c.l.b16 %v106
    %v668 = vunpack.c.h.b16 %v106
    %v669 = vunpack.c.l.b16 %v107
    %v670 = vunpack.c.h.b16 %v107
    %v671 = vunpack.c.l.b16 %v108
    %v672 = vunpack.c.h.b16 %v108
    %v673 = vunpack.c.l.b16 %v109
    %v674 = vunpack.c.h.b16 %v109
    %v675 = vunpack.c.l.b16 %v110
    %v676 = vunpack.c.h.b16 %v110
    %v677 = vunpack.c.l.b16 %v111
    %v678 = vunpack.c.h.b16 %v111
    %v679 = vunpack.c.l.b16 %v112
    %v680 = vunpack.c.h.b16 %v112
    %v681 = vunpack.c.l.b16 %v113
    %v682 = vunpack.c.h.b16 %v113
    %v683 = vunpack.c.l.b16 %v114
    %v684 = vunpack.c.h.b16 %v114
    %v685 = vunpack.c.l.b16 %v115
    %v686 = vunpack.c.h.b16 %v115
    %v687 = vunpack.c.l.b16 %v116
    %v688 = vunpack.c.h.b16 %v116
    %v689 = vunpack.c.l.b16 %v117
    %v690 = vunpack.c.h.b16 %v117
    %v691 = vunpack.c.l.b16 %v118
    %v692 = vunpack.c.h.b16 %v118
    %v693 = vunpack.c.l.b16 %v119
    %v694 = vunpack.c.h.b16 %v119
    %v695 = vunpack.c.l.b16 %v120
    %v696 = vunpack.c.h.b16 %v120
    %v697 = vunpack.c.l.b16 %v121
    %v698 = vunpack.c.h.b16 %v121
    %v699 = vunpack.c.l.b16 %v122
    %v700 = vunpack.c.h.b16 %v122
    %v701 = vunpack.c.l.b16 %v123
    %v702 = vunpack.c.h.b16 %v123
    %v703 = vunpack.c.l.b16 %v124
    %v704 = vunpack.c.h.b16 %v124
    %v705 = vunpack.c.l.b16 %v125
    %v706 = vunpack.c.h.b16 %v125
    %v707 = vunpack.c.l.b16 %v126
    %v708 = vunpack.c.h.b16 %v126
    %v709 = vunpack.c.l.b16 %v127
    %v710 = vunpack.c.h.b16 %v127
    %v711 = vunpack.c.l.b16 %v128
    %v712 = vunpack.c.h.b16 %v128
    %v713 = vunpack.c.l.b16 %v129
    %v714 = vunpack.c.h.b16 %v129
    %v715 = vunpack.c.l.b16 %v130
    %v716 = vunpack.c.h.b16 %v130
    %v717 = vunpack.c.l.b16 %v131
    %v718 = vunpack.c.h.b16 %v131
    %v719 = vunpack.c.l.b16 %v132
    %v720 = vunpack.c.h.b16 %v132
    %v721 = vunpack.c.l.b16 %v133
    %v722 = vunpack.c.h.b16 %v133
    %v723 = vunpack.c.l.b16 %v134
    %v724 = vunpack.c.h.b16 %v134
    %v725 = vunpack.c.l.b16 %v135
    %v726 = vunpack.c.h.b16 %v135
    %v727 = vunpack.c.l.b16 %v136
    %v728 = vunpack.c.h.b16 %v136
    %v729 = vunpack.c.l.b16 %v137
    %v730 = vunpack.c.h.b16 %v137
    %v731 = vunpack.c.l.b16 %v138
    %v732 = vunpack.c.h.b16 %v138
    %v733 = vunpack.c.l.b16 %v139
    %v734 = vunpack.c.h.b16 %v139
    %v735 = vunpack.c.l.b16 %v140
    %v736 = vunpack.c.h.b16 %v140
    %v737 = vunpack.c.l.b16 %v141
    %v738 = vunpack.c.h.b16 %v141
    %v739 = vunpack.c.l.b16 %v142
    %v740 = vunpack.c.h.b16 %v142
    %v741 = vunpack.c.l.b16 %v143
    %v742 = vunpack.c.h.b16 %v143
    %v743 = vunpack.c.l.b16 %v144
    %v744 = vunpack.c.h.b16 %v144
    %v745 = vunpack.c.l.b16 %v145
    %v746 = vunpack.c.h.b16 %v145
    %v747 = vunpack.c.l.b16 %v146
    %v748 = vunpack.c.h.b16 %v146
    %v749 = vunpack.c.l.b16 %v147
    %v750 = vunpack.c.h.b16 %v147
    %v751 = vunpack.c.l.b16 %v148
    %v752 = vunpack.c.h.b16 %v148
    %v753 = vunpack.c.l.b16 %v149
    %v754 = vunpack.c.h.b16 %v149
    %v755 = vunpack.c.l.b16 %v150
    %v756 = vunpack.c.h.b16 %v150
    %v757 = vunpack.c.l.b16 %v151
    %v758 = vunpack.c.h.b16 %v151
    %v759 = vunpack.c.l.b16 %v152
    %v760 = vunpack.c.h.b16 %v152
    %v761 = vunpack.c.l.b16 %v153
    %v762 = vunpack.c.h.b16 %v153
    %v763 = vunpack.c.l.b16 %v154
    %v764 = vunpack.c.h.b16 %v154
    %v765 = vunpack.c.l.b16 %v155
    %v766 = vunpack.c.h.b16 %v155
    %v767 = vunpack.c.l.b16 %v156
    %v768 = vunpack.c.h.b16 %v156
    %v769 = vunpack.c.l.b16 %v157
    %v770 = vunpack.c.h.b16 %v157
    %v771 = vunpack.c.l.b16 %v158
    %v772 = vunpack.c.h.b16 %v158
    %v773 = vunpack.c.l.b16 %v159
    %v774 = vunpack.c.h.b16 %v159
    %v775 = vunpack.c.l.b16 %v160
    %v776 = vunpack.c.h.b16 %v160
    %v777 = vunpack.c.l.b16 %v161
    %v778 = vunpack.c.h.b16 %v161
    %v779 = vunpack.c.l.b16 %v162
    %v780 = vunpack.c.h.b16 %v162
    %v781 = vunpack.c.l.b16 %v163
    %v782 = vunpack.c.h.b16 %v163
    %v783 = vunpack.c.l.b16 %v164
    %v784 = vunpack.c.h.b16 %v164
    %v785 = vunpack.c.l.b16 %v165
    %v786 = vunpack.c.h.b16 %v165
    %v787 = vpack.c.b16 %v601, %v595
    %v788 = vpack.c.b16 %v602, %v596
    %v789 = vpack.c.b16 %v603, %v597
    %v790 = vpack.c.b16 %v604, %v598
    %v791 = vpack.c.b16 %v605, %v599
    %v792 = vpack.c.b16 %v606, %v600
    %v793 = vpack.c.b16 %v613, %v607
    %v794 = vpack.c.b16 %v614, %v608
    %v795 = vpack.c.b16 %v615, %v609
    %v796 = vpack.c.b16 %v616, %v610
    %v797 = vpack.c.b16 %v617, %v611
    %v798 = vpack.c.b16 %v618, %v612
    %v799 = vpack.c.b16 %v625, %v619
    %v800 = vpack.c.b16 %v626, %v620
    %v801 = vpack.c.b16 %v627, %v621
    %v802 = vpack.c.b16 %v628, %v622
    %v803 = vpack.c.b16 %v629, %v623
    %v804 = vpack.c.b16 %v630, %v624
    %v805 = vpack.c.b16 %v637, %v631
    %v806 = vpack.c.b16 %v638, %v632
    %v807 = vpack.c.b16 %v639, %v633
    %v808 = vpack.c.b16 %v640, %v634
    %v809 = vpack.c.b16 %v641, %v635
    %v810 = vpack.c.b16 %v642, %v636
    %v811 = vpack.c.b16 %v649, %v643
    %v812 = vpack.c.b16 %v650, %v644
    %v813 = vpack.c.b16 %v651, %v645
    %v814 = vpack.c.b16 %v652, %v646
    %v815 = vpack.c.b16 %v653, %v647
    %v816 = vpack.c.b16 %v654, %v648
    %v817 = vpack.c.b16 %v661, %v655
    %v818 = vpack.c.b16 %v662, %v656
    %v819 = vpack.c.b16 %v663, %v657
    %v820 = vpack.c.b16 %v664, %v658
    %v821 = vpack.c.b16 %v665, %v659
    %v822 = vpack.c.b16 %v666, %v660
    %v823 = vpack.c.b16 %v673, %v667
    %v824 = vpack.c.b16 %v674, %v668
    %v825 = vpack.c.b16 %v675, %v669
    %v826 = vpack.c.b16 %v676, %v670
    %v827 = vpack.c.b16 %v677, %v671
    %v828 = vpack.c.b16 %v678, %v672
    %v829 = vpack.c.b16 %v685, %v679
    %v830 = vpack.c.b16 %v686, %v680
    %v831 = vpack.c.b16 %v687, %v681
    %v832 = vpack.c.b16 %v688, %v682
    %v833 = vpack.c.b16 %v689, %v683
    %v834 = vpack.c.b16 %v690, %v684
    %v835 = vpack.c.b16 %v697, %v691
    %v836 = vpack.c.b16 %v698, %v692
    %v837 = vpack.c.b16 %v699, %v693
    %v838 = vpack.c.b16 %v700, %v694
    %v839 = vpack.c.b16 %v701, %v695
    %v840 = vpack.c.b16 %v702, %v696
    %v841 = vpack.c.b16 %v709, %v703
    %v842 = vpack.c.b16 %v710, %v704
    %v843 = vpack.c.b16 %v711, %v705
    %v844 = vpack.c.b16 %v712, %v706
    %v845 = vpack.c.b16 %v713, %v707
    %v846 = vpack.c.b16 %v714, %v708
    %v847 = vpack.c.b16 %v721, %v715
    %v848 = vpack.c.b16 %v722, %v716
    %v849 = vpack.c.b16 %v723, %v717
    %v850 = vpack.c.b16 %v724, %v718
    %v851 = vpack.c.b16 %v725, %v719
    %v852 = vpack.c.b16 %v726, %v720
    %v853 = vpack.c.b16 %v733, %v727
    %v854 = vpack.c.b16 %v734, %v728
    %v855 = vpack.c.b16 %v735, %v729
    %v856 = vpack.c.b16 %v736, %v730
    %v857 = vpack.c.b16 %v737, %v731
    %v858 = vpack.c.b16 %v738, %v732
    %v859 = vpack.c.b16 %v745, %v739
    %v860 = vpack.c.b16 %v746, %v740
    %v861 = vpack.c.b16 %v747, %v741
    %v862 = vpack.c.b16 %v748, %v742
    %v863 = vpack.c.b16 %v749, %v743
    %v864 = vpack.c.b16 %v750, %v744
    %v865 = vpack.c.b16 %v757, %v751
    %v866 = vpack.c.b16 %v758, %v752
    %v867 = vpack.c.b16 %v759, %v753
    %v868 = vpack.c.b16 %v760, %v754
    %v869 = vpack.c.b16 %v761, %v755
    %v870 = vpack.c.b16 %v762, %v756
    %v871 = vpack.c.b16 %v769, %v763
    %v872 = vpack.c.b16 %v770, %v764
    %v873 = vpack.c.b16 %v771, %v765
    %v874 = vpack.c.b16 %v772, %v766
    %v875 = vpack.c.b16 %v773, %v767
    %v876 = vpack.c.b16 %v774, %v768
    %v877 = vpack.c.b16 %v781, %v775
    %v878 = vpack.c.b16 %v782, %v776
    %v879 = vpack.c.b16 %v783, %v777
    %v880 = vpack.c.b16 %v784, %v778
    %v881 = vpack.c.b16 %v785, %v779
    %v882 = vpack.c.b16 %v786, %v780
    %979 = vmatprep.subr.bf16.mxu0 %v788
    %980 = vmatpush1.bf16.msra.mxu0 %v787
    %981 = vmatprep.subr.bf16.mxu0 %v794
    %982 = vmatpush1.bf16.msra.mxu0 %v793
    %983 = vmatprep.subr.bf16.mxu0 %v800
    %984 = vmatpush1.bf16.msra.mxu0 %v799
    %985 = vmatprep.subr.bf16.mxu0 %v806
    %986 = vmatpush1.bf16.msra.mxu0 %v805
    %987 = vmatprep.subr.bf16.mxu0 %v812
    %988 = vmatpush1.bf16.msra.mxu0 %v811
    %989 = vmatprep.subr.bf16.mxu0 %v818
    %990 = vmatpush1.bf16.msra.mxu0 %v817
    %991 = vmatprep.subr.bf16.mxu0 %v824
    %992 = vmatpush1.bf16.msra.mxu0 %v823
    %993 = vmatprep.subr.bf16.mxu0 %v830
    %994 = vmatpush1.bf16.msra.mxu0 %v829
    %995 = vmatprep.subr.bf16.mxu0 %v836
    %996 = vmatpush1.bf16.msra.mxu0 %v835
    %997 = vmatprep.subr.bf16.mxu0 %v842
    %998 = vmatpush1.bf16.msra.mxu0 %v841
    %999 = vmatprep.subr.bf16.mxu0 %v848
    %1000 = vmatpush1.bf16.msra.mxu0 %v847
    %1001 = vmatprep.subr.bf16.mxu0 %v854
    %1002 = vmatpush1.bf16.msra.mxu0 %v853
    %1003 = vmatprep.subr.bf16.mxu0 %v860
    %1004 = vmatpush1.bf16.msra.mxu0 %v859
    %1005 = vmatprep.subr.bf16.mxu0 %v866
    %1006 = vmatpush1.bf16.msra.mxu0 %v865
    %1007 = vmatprep.subr.bf16.mxu0 %v872
    %1008 = vmatpush1.bf16.msra.mxu0 %v871
    %1009 = vmatprep.subr.bf16.mxu0 %v878
    %1010 = vmatpush1.bf16.msra.mxu0 %v877
    %1011 = vmatprep.mubr.bf16.mxu0 %v467
    %1012 = vmatmul.mubr.bf16.gmra.mrb[0].mxu0 %v466
    %v1013 = vpop.f32.mrb[0].mxu0
    %v1014 = vadd.f32 %v472, %v1013
    %v1015 = vpop.f32.mrb[0].mxu0
    %v1016 = vadd.f32 %v476, %v1015
    %v1017 = vpop.f32.mrb[0].mxu0
    %v1018 = vadd.f32 %v472, %v1017
    %v1019 = vpop.f32.mrb[0].mxu0
    %v1020 = vadd.f32 %v476, %v1019
    %1021 = vdwg.mxu0
    %1022 = vmatprep.subr.bf16.mxu0 %v790
    %1023 = vmatpush1.bf16.msra.mxu0 %v789
    %1024 = vmatprep.subr.bf16.mxu0 %v796
    %1025 = vmatpush1.bf16.msra.mxu0 %v795
    %1026 = vmatprep.subr.bf16.mxu0 %v802
    %1027 = vmatpush1.bf16.msra.mxu0 %v801
    %1028 = vmatprep.subr.bf16.mxu0 %v808
    %1029 = vmatpush1.bf16.msra.mxu0 %v807
    %1030 = vmatprep.subr.bf16.mxu0 %v814
    %1031 = vmatpush1.bf16.msra.mxu0 %v813
    %1032 = vmatprep.subr.bf16.mxu0 %v820
    %1033 = vmatpush1.bf16.msra.mxu0 %v819
    %1034 = vmatprep.subr.bf16.mxu0 %v826
    %1035 = vmatpush1.bf16.msra.mxu0 %v825
    %1036 = vmatprep.subr.bf16.mxu0 %v832
    %1037 = vmatpush1.bf16.msra.mxu0 %v831
    %1038 = vmatprep.subr.bf16.mxu0 %v838
    %1039 = vmatpush1.bf16.msra.mxu0 %v837
    %1040 = vmatprep.subr.bf16.mxu0 %v844
    %1041 = vmatpush1.bf16.msra.mxu0 %v843
    %1042 = vmatprep.subr.bf16.mxu0 %v850
    %1043 = vmatpush1.bf16.msra.mxu0 %v849
    %1044 = vmatprep.subr.bf16.mxu0 %v856
    %1045 = vmatpush1.bf16.msra.mxu0 %v855
    %1046 = vmatprep.subr.bf16.mxu0 %v862
    %1047 = vmatpush1.bf16.msra.mxu0 %v861
    %1048 = vmatprep.subr.bf16.mxu0 %v868
    %1049 = vmatpush1.bf16.msra.mxu0 %v867
    %1050 = vmatprep.subr.bf16.mxu0 %v874
    %1051 = vmatpush1.bf16.msra.mxu0 %v873
    %1052 = vmatprep.subr.bf16.mxu0 %v880
    %1053 = vmatpush1.bf16.msra.mxu0 %v879
    %1054 = vmatprep.mubr.bf16.mxu0 %v467
    %1055 = vmatmul.mubr.bf16.gmra.mrb[0].mxu0 %v466
    %v1056 = vpop.f32.mrb[0].mxu0
    %v1057 = vadd.f32 %v480, %v1056
    %v1058 = vpop.f32.mrb[0].mxu0
    %v1059 = vadd.f32 %v484, %v1058
    %v1060 = vpop.f32.mrb[0].mxu0
    %v1061 = vadd.f32 %v480, %v1060
    %v1062 = vpop.f32.mrb[0].mxu0
    %v1063 = vadd.f32 %v484, %v1062
    %1064 = vdwg.mxu0
    %1065 = vmatprep.subr.bf16.mxu0 %v792
    %1066 = vmatpush1.bf16.msra.mxu0 %v791
    %1067 = vmatprep.subr.bf16.mxu0 %v798
    %1068 = vmatpush1.bf16.msra.mxu0 %v797
    %1069 = vmatprep.subr.bf16.mxu0 %v804
    %1070 = vmatpush1.bf16.msra.mxu0 %v803
    %1071 = vmatprep.subr.bf16.mxu0 %v810
    %1072 = vmatpush1.bf16.msra.mxu0 %v809
    %1073 = vmatprep.subr.bf16.mxu0 %v816
    %1074 = vmatpush1.bf16.msra.mxu0 %v815
    %1075 = vmatprep.subr.bf16.mxu0 %v822
    %1076 = vmatpush1.bf16.msra.mxu0 %v821
    %1077 = vmatprep.subr.bf16.mxu0 %v828
    %1078 = vmatpush1.bf16.msra.mxu0 %v827
    %1079 = vmatprep.subr.bf16.mxu0 %v834
    %1080 = vmatpush1.bf16.msra.mxu0 %v833
    %1081 = vmatprep.subr.bf16.mxu0 %v840
    %1082 = vmatpush1.bf16.msra.mxu0 %v839
    %1083 = vmatprep.subr.bf16.mxu0 %v846
    %1084 = vmatpush1.bf16.msra.mxu0 %v845
    %1085 = vmatprep.subr.bf16.mxu0 %v852
    %1086 = vmatpush1.bf16.msra.mxu0 %v851
    %1087 = vmatprep.subr.bf16.mxu0 %v858
    %1088 = vmatpush1.bf16.msra.mxu0 %v857
    %1089 = vmatprep.subr.bf16.mxu0 %v864
    %1090 = vmatpush1.bf16.msra.mxu0 %v863
    %1091 = vmatprep.subr.bf16.mxu0 %v870
    %1092 = vmatpush1.bf16.msra.mxu0 %v869
    %1093 = vmatprep.subr.bf16.mxu0 %v876
    %1094 = vmatpush1.bf16.msra.mxu0 %v875
    %1095 = vmatprep.subr.bf16.mxu0 %v882
    %1096 = vmatpush1.bf16.msra.mxu0 %v881
    %1097 = vmatprep.mubr.bf16.mxu0 %v467
    %1098 = vmatmul.mubr.bf16.gmra.mrb[0].mxu0 %v466
    %v1099 = vpop.f32.mrb[0].mxu0
    %v1100 = vadd.f32 %v488, %v1099
    %v1101 = vpop.f32.mrb[0].mxu0
    %v1102 = vadd.f32 %v492, %v1101
    %v1103 = vpop.f32.mrb[0].mxu0
    %v1104 = vadd.f32 %v488, %v1103
    %v1105 = vpop.f32.mrb[0].mxu0
    %v1106 = vadd.f32 %v492, %v1105
    %1107 = vdwg.mxu0
    %1108 = vst [vmem:[#allocation5] sm:$0xff] %v1014
    %1109 = vst [vmem:[#allocation5 + $0x8] sm:$0xff] %v1016
    %1110 = vst [vmem:[#allocation5 + $0x10] sm:$0xff] %v1057
    %1111 = vst [vmem:[#allocation5 + $0x18] sm:$0xff] %v1059
    %1112 = vst [vmem:[#allocation5 + $0x20] sm:$0xff] %v1100
    %1113 = vst [vmem:[#allocation5 + $0x28] sm:$0xff] %v1102
    %1114 = vst [vmem:[#allocation5 + $0x30] sm:$0xff] %v1018
    %1115 = vst [vmem:[#allocation5 + $0x38] sm:$0xff] %v1020
    %1116 = vst [vmem:[#allocation5 + $0x40] sm:$0xff] %v1061
    %1117 = vst [vmem:[#allocation5 + $0x48] sm:$0xff] %v1063
    %1118 = vst [vmem:[#allocation5 + $0x50] sm:$0xff] %v1104
    %1119 = vst [vmem:[#allocation5 + $0x58] sm:$0xff] %v1106
    %v1120 = vadd.f32 %v1014, %v1018
    %v1121 = vrot.slane %v1120, 4
    %v1122 = vadd.f32 %v1120, %v1121
    %v1123 = vrot.slane %v1122, 2
    %v1124 = vadd.f32 %v1122, %v1123
    %v1125 = vrot.slane %v1124, 1
    %v1126 = vadd.f32 %v1124, %v1125
    %v1127 = vadd.f32 %v1016, %v1020
    %v1128 = vrot.slane %v1127, 4
    %v1129 = vadd.f32 %v1127, %v1128
    %v1130 = vrot.slane %v1129, 2
    %v1131 = vadd.f32 %v1129, %v1130
    %v1132 = vrot.slane %v1131, 1
    %v1133 = vadd.f32 %v1131, %v1132
    %v1134 = vadd.f32 %v1057, %v1061
    %v1135 = vrot.slane %v1134, 4
    %v1136 = vadd.f32 %v1134, %v1135
    %v1137 = vrot.slane %v1136, 2
    %v1138 = vadd.f32 %v1136, %v1137
    %v1139 = vrot.slane %v1138, 1
    %v1140 = vadd.f32 %v1138, %v1139
    %v1141 = vadd.f32 %v1059, %v1063
    %v1142 = vrot.slane %v1141, 4
    %v1143 = vadd.f32 %v1141, %v1142
    %v1144 = vrot.slane %v1143, 2
    %v1145 = vadd.f32 %v1143, %v1144
    %v1146 = vrot.slane %v1145, 1
    %v1147 = vadd.f32 %v1145, %v1146
    %v1148 = vadd.f32 %v1100, %v1104
    %v1149 = vrot.slane %v1148, 4
    %v1150 = vadd.f32 %v1148, %v1149
    %v1151 = vrot.slane %v1150, 2
    %v1152 = vadd.f32 %v1150, %v1151
    %v1153 = vrot.slane %v1152, 1
    %v1154 = vadd.f32 %v1152, %v1153
    %v1155 = vadd.f32 %v1102, %v1106
    %v1156 = vrot.slane %v1155, 4
    %v1157 = vadd.f32 %v1155, %v1156
    %v1158 = vrot.slane %v1157, 2
    %v1159 = vadd.f32 %v1157, %v1158
    %v1160 = vrot.slane %v1159, 1
    %v1161 = vadd.f32 %v1159, %v1160
    %v1162 = vrcp.pop 16.0
    %v1163 = vmul.f32 %v1126, %v1162
    %v1164 = vmul.f32 %v1133, %v1162
    %v1165 = vmul.f32 %v1140, %v1162
    %v1166 = vmul.f32 %v1147, %v1162
    %v1167 = vmul.f32 %v1154, %v1162
    %v1168 = vmul.f32 %v1161, %v1162
    %s1169 = scalar_lea.vmem %s0, 256
    %v1170 = vld [vmem:[%s1169] sm:$0xff]
    %v1171 = vld [vmem:[%s1169 + $0x8] sm:$0xff]
    %v1172 = vld [vmem:[%s1169 + $0x10] sm:$0xff]
    %v1173 = vld [vmem:[%s1169 + $0x18] sm:$0xff]
    %v1174 = vld [vmem:[%s1169 + $0x20] sm:$0xff]
    %v1175 = vld [vmem:[%s1169 + $0x28] sm:$0xff]
    %v1176 = vld [vmem:[%s1169 + $0x30] sm:$0xff]
    %v1177 = vld [vmem:[%s1169 + $0x38] sm:$0xff]
    %v1178 = vld [vmem:[%s1169 + $0x40] sm:$0xff]
    %v1179 = vld [vmem:[%s1169 + $0x48] sm:$0xff]
    %v1180 = vld [vmem:[%s1169 + $0x50] sm:$0xff]
    %v1181 = vld [vmem:[%s1169 + $0x58] sm:$0xff]
    %v1182 = vld [vmem:[%s1169 + $0x60] sm:$0xff]
    %v1183 = vld [vmem:[%s1169 + $0x68] sm:$0xff]
    %v1184 = vld [vmem:[%s1169 + $0x70] sm:$0xff]
    %v1185 = vld [vmem:[%s1169 + $0x78] sm:$0xff]
    %v1186 = vld [vmem:[%s1169 + $0x80] sm:$0xff]
    %v1187 = vld [vmem:[%s1169 + $0x88] sm:$0xff]
    %v1188 = vld [vmem:[%s1169 + $0x90] sm:$0xff]
    %v1189 = vld [vmem:[%s1169 + $0x98] sm:$0xff]
    %v1190 = vld [vmem:[%s1169 + $0xa0] sm:$0xff]
    %v1191 = vld [vmem:[%s1169 + $0xa8] sm:$0xff]
    %v1192 = vld [vmem:[%s1169 + $0xb0] sm:$0xff]
    %v1193 = vld [vmem:[%s1169 + $0xb8] sm:$0xff]
    %v1194 = vld [vmem:[%s1169 + $0xc0] sm:$0xff]
    %v1195 = vld [vmem:[%s1169 + $0xc8] sm:$0xff]
    %v1196 = vld [vmem:[%s1169 + $0xd0] sm:$0xff]
    %v1197 = vld [vmem:[%s1169 + $0xd8] sm:$0xff]
    %v1198 = vld [vmem:[%s1169 + $0xe0] sm:$0xff]
    %v1199 = vld [vmem:[%s1169 + $0xe8] sm:$0xff]
    %v1200 = vld [vmem:[%s1169 + $0xf0] sm:$0xff]
    %v1201 = vld [vmem:[%s1169 + $0xf8] sm:$0xff]
    %v1202 = vpack.c.bf16 %v1171, %v1170
    %v1203 = vpack.c.bf16 %v1173, %v1172
    %v1204 = vpack.c.bf16 %v1175, %v1174
    %v1205 = vpack.c.bf16 %v1177, %v1176
    %v1206 = vpack.c.bf16 %v1179, %v1178
    %v1207 = vpack.c.bf16 %v1181, %v1180
    %v1208 = vpack.c.bf16 %v1183, %v1182
    %v1209 = vpack.c.bf16 %v1185, %v1184
    %v1210 = vpack.c.bf16 %v1187, %v1186
    %v1211 = vpack.c.bf16 %v1189, %v1188
    %v1212 = vpack.c.bf16 %v1191, %v1190
    %v1213 = vpack.c.bf16 %v1193, %v1192
    %v1214 = vpack.c.bf16 %v1195, %v1194
    %v1215 = vpack.c.bf16 %v1197, %v1196
    %v1216 = vpack.c.bf16 %v1199, %v1198
    %v1217 = vpack.c.bf16 %v1201, %v1200
    %1218 = vxpose.xlu0.c.b16.start [1/8] %v1202, 128
    %1219 = vxpose.xlu0.c.b16.cont [2/8] %v1203, 128
    %1220 = vxpose.xlu0.c.b16.cont [3/8] %v1204, 128
    %1221 = vxpose.xlu0.c.b16.cont [4/8] %v1205, 128
    %1222 = vxpose.xlu0.c.b16.cont [5/8] %v1206, 128
    %1223 = vxpose.xlu0.c.b16.cont [6/8] %v1207, 128
    %1224 = vxpose.xlu0.c.b16.cont [7/8] %v1208, 128
    %1225 = vxpose.xlu0.c.b16.end [8/8] %v1209, 128
    %v1226 = vpop.trf.xlu0
    %v1227 = vpop.trf.xlu0
    %v1228 = vpop.trf.xlu0
    %v1229 = vpop.trf.xlu0
    %v1230 = vpop.trf.xlu0
    %v1231 = vpop.trf.xlu0
    %v1232 = vpop.trf.xlu0
    %v1233 = vpop.trf.xlu0
    %1234 = vxpose.xlu0.c.b16.start [1/8] %v1210, 128
    %1235 = vxpose.xlu0.c.b16.cont [2/8] %v1211, 128
    %1236 = vxpose.xlu0.c.b16.cont [3/8] %v1212, 128
    %1237 = vxpose.xlu0.c.b16.cont [4/8] %v1213, 128
    %1238 = vxpose.xlu0.c.b16.cont [5/8] %v1214, 128
    %1239 = vxpose.xlu0.c.b16.cont [6/8] %v1215, 128
    %1240 = vxpose.xlu0.c.b16.cont [7/8] %v1216, 128
    %1241 = vxpose.xlu0.c.b16.end [8/8] %v1217, 128
    %v1242 = vpop.trf.xlu0
    %v1243 = vpop.trf.xlu0
    %v1244 = vpop.trf.xlu0
    %v1245 = vpop.trf.xlu0
    %v1246 = vpop.trf.xlu0
    %v1247 = vpop.trf.xlu0
    %v1248 = vpop.trf.xlu0
    %v1249 = vpop.trf.xlu0
    %1250 = vmatprep.subr.bf16.mxu0 %v356
    %1251 = vmatpush1.bf16.msra.mxu0 %v355
    %1252 = vmatprep.subr.bf16.mxu0 %v358
    %1253 = vmatpush1.bf16.msra.mxu0 %v357
    %1254 = vmatprep.subr.bf16.mxu0 %v360
    %1255 = vmatpush1.bf16.msra.mxu0 %v359
    %1256 = vmatprep.subr.bf16.mxu0 %v362
    %1257 = vmatpush1.bf16.msra.mxu0 %v361
    %1258 = vmatprep.subr.bf16.mxu0 %v364
    %1259 = vmatpush1.bf16.msra.mxu0 %v363
    %1260 = vmatprep.subr.bf16.mxu0 %v366
    %1261 = vmatpush1.bf16.msra.mxu0 %v365
    %1262 = vmatprep.subr.bf16.mxu0 %v368
    %1263 = vmatpush1.bf16.msra.mxu0 %v367
    %1264 = vmatprep.subr.bf16.mxu0 %v370
    %1265 = vmatpush1.bf16.msra.mxu0 %v369
    %1266 = vmatprep.subr.bf16.mxu0 %v372
    %1267 = vmatpush1.bf16.msra.mxu0 %v371
    %1268 = vmatprep.subr.bf16.mxu0 %v374
    %1269 = vmatpush1.bf16.msra.mxu0 %v373
    %1270 = vmatprep.subr.bf16.mxu0 %v376
    %1271 = vmatpush1.bf16.msra.mxu0 %v375
    %1272 = vmatprep.subr.bf16.mxu0 %v378
    %1273 = vmatpush1.bf16.msra.mxu0 %v377
    %1274 = vmatprep.subr.bf16.mxu0 %v380
    %1275 = vmatpush1.bf16.msra.mxu0 %v379
    %1276 = vmatprep.subr.bf16.mxu0 %v382
    %1277 = vmatpush1.bf16.msra.mxu0 %v381
    %1278 = vmatprep.subr.bf16.mxu0 %v384
    %1279 = vmatpush1.bf16.msra.mxu0 %v383
    %1280 = vmatprep.subr.bf16.mxu0 %v386
    %1281 = vmatpush1.bf16.msra.mxu0 %v385
    %1282 = vmatprep.mubr.bf16.mxu0 %v1242
    %1283 = vmatmul.mubr.bf16.gmra.mrb[0].mxu0 %v1226
    %v1284 = vpop.f32.mrb[0].mxu0
    %v1285 = vadd.f32 %v220, %v1284
    %v1286 = vpop.f32.mrb[0].mxu0
    %v1287 = vadd.f32 %v224, %v1286
    %v1288 = vpop.f32.mrb[0].mxu0
    %v1289 = vadd.f32 %v220, %v1288
    %v1290 = vpop.f32.mrb[0].mxu0
    %v1291 = vadd.f32 %v224, %v1290
    %1292 = vdwg.mxu0
    %v1293 = vmax.f32 %v1285, 0.0
    %v1294 = vmax.f32 %v1287, 0.0
    %v1295 = vmax.f32 %v1289, 0.0
    %v1296 = vmax.f32 %v1291, 0.0
    %v1297 = vpack.c.bf16 %v1295, %v1293
    %v1298 = vpack.c.bf16 %v1296, %v1294
    %1299 = vmatprep.subr.bf16.mxu0 %v788
    %1300 = vmatpush1.bf16.msra.mxu0 %v787
    %1301 = vmatprep.subr.bf16.mxu0 %v794
    %1302 = vmatpush1.bf16.msra.mxu0 %v793
    %1303 = vmatprep.subr.bf16.mxu0 %v800
    %1304 = vmatpush1.bf16.msra.mxu0 %v799
    %1305 = vmatprep.subr.bf16.mxu0 %v806
    %1306 = vmatpush1.bf16.msra.mxu0 %v805
    %1307 = vmatprep.subr.bf16.mxu0 %v812
    %1308 = vmatpush1.bf16.msra.mxu0 %v811
    %1309 = vmatprep.subr.bf16.mxu0 %v818
    %1310 = vmatpush1.bf16.msra.mxu0 %v817
    %1311 = vmatprep.subr.bf16.mxu0 %v824
    %1312 = vmatpush1.bf16.msra.mxu0 %v823
    %1313 = vmatprep.subr.bf16.mxu0 %v830
    %1314 = vmatpush1.bf16.msra.mxu0 %v829
    %1315 = vmatprep.subr.bf16.mxu0 %v836
    %1316 = vmatpush1.bf16.msra.mxu0 %v835
    %1317 = vmatprep.subr.bf16.mxu0 %v842
    %1318 = vmatpush1.bf16.msra.mxu0 %v841
    %1319 = vmatprep.subr.bf16.mxu0 %v848
    %1320 = vmatpush1.bf16.msra.mxu0 %v847
    %1321 = vmatprep.subr.bf16.mxu0 %v854
    %1322 = vmatpush1.bf16.msra.mxu0 %v853
    %1323 = vmatprep.subr.bf16.mxu0 %v860
    %1324 = vmatpush1.bf16.msra.mxu0 %v859
    %1325 = vmatprep.subr.bf16.mxu0 %v866
    %1326 = vmatpush1.bf16.msra.mxu0 %v865
    %1327 = vmatprep.subr.bf16.mxu0 %v872
    %1328 = vmatpush1.bf16.msra.mxu0 %v871
    %1329 = vmatprep.subr.bf16.mxu0 %v878
    %1330 = vmatpush1.bf16.msra.mxu0 %v877
    %1331 = vmatprep.mubr.bf16.mxu0 %v1298
    %1332 = vmatmul.mubr.bf16.gmra.mrb[0].mxu0 %v1297
    %v1333 = vpop.f32.mrb[0].mxu0
    %v1334 = vadd.f32 %v472, %v1333
    %v1335 = vpop.f32.mrb[0].mxu0
    %v1336 = vadd.f32 %v476, %v1335
    %v1337 = vpop.f32.mrb[0].mxu0
    %v1338 = vadd.f32 %v472, %v1337
    %v1339 = vpop.f32.mrb[0].mxu0
    %v1340 = vadd.f32 %v476, %v1339
    %1341 = vdwg.mxu0
    %1342 = vmatprep.subr.bf16.mxu0 %v790
    %1343 = vmatpush1.bf16.msra.mxu0 %v789
    %1344 = vmatprep.subr.bf16.mxu0 %v796
    %1345 = vmatpush1.bf16.msra.mxu0 %v795
    %1346 = vmatprep.subr.bf16.mxu0 %v802
    %1347 = vmatpush1.bf16.msra.mxu0 %v801
    %1348 = vmatprep.subr.bf16.mxu0 %v808
    %1349 = vmatpush1.bf16.msra.mxu0 %v807
    %1350 = vmatprep.subr.bf16.mxu0 %v814
    %1351 = vmatpush1.bf16.msra.mxu0 %v813
    %1352 = vmatprep.subr.bf16.mxu0 %v820
    %1353 = vmatpush1.bf16.msra.mxu0 %v819
    %1354 = vmatprep.subr.bf16.mxu0 %v826
    %1355 = vmatpush1.bf16.msra.mxu0 %v825
    %1356 = vmatprep.subr.bf16.mxu0 %v832
    %1357 = vmatpush1.bf16.msra.mxu0 %v831
    %1358 = vmatprep.subr.bf16.mxu0 %v838
    %1359 = vmatpush1.bf16.msra.mxu0 %v837
    %1360 = vmatprep.subr.bf16.mxu0 %v844
    %1361 = vmatpush1.bf16.msra.mxu0 %v843
    %1362 = vmatprep.subr.bf16.mxu0 %v850
    %1363 = vmatpush1.bf16.msra.mxu0 %v849
    %1364 = vmatprep.subr.bf16.mxu0 %v856
    %1365 = vmatpush1.bf16.msra.mxu0 %v855
    %1366 = vmatprep.subr.bf16.mxu0 %v862
    %1367 = vmatpush1.bf16.msra.mxu0 %v861
    %1368 = vmatprep.subr.bf16.mxu0 %v868
    %1369 = vmatpush1.bf16.msra.mxu0 %v867
    %1370 = vmatprep.subr.bf16.mxu0 %v874
    %1371 = vmatpush1.bf16.msra.mxu0 %v873
    %1372 = vmatprep.subr.bf16.mxu0 %v880
    %1373 = vmatpush1.bf16.msra.mxu0 %v879
    %1374 = vmatprep.mubr.bf16.mxu0 %v1298
    %1375 = vmatmul.mubr.bf16.gmra.mrb[0].mxu0 %v1297
    %v1376 = vpop.f32.mrb[0].mxu0
    %v1377 = vadd.f32 %v480, %v1376
    %v1378 = vpop.f32.mrb[0].mxu0
    %v1379 = vadd.f32 %v484, %v1378
    %v1380 = vpop.f32.mrb[0].mxu0
    %v1381 = vadd.f32 %v480, %v1380
    %v1382 = vpop.f32.mrb[0].mxu0
    %v1383 = vadd.f32 %v484, %v1382
    %1384 = vdwg.mxu0
    %1385 = vmatprep.subr.bf16.mxu0 %v792
    %1386 = vmatpush1.bf16.msra.mxu0 %v791
    %1387 = vmatprep.subr.bf16.mxu0 %v798
    %1388 = vmatpush1.bf16.msra.mxu0 %v797
    %1389 = vmatprep.subr.bf16.mxu0 %v804
    %1390 = vmatpush1.bf16.msra.mxu0 %v803
    %1391 = vmatprep.subr.bf16.mxu0 %v810
    %1392 = vmatpush1.bf16.msra.mxu0 %v809
    %1393 = vmatprep.subr.bf16.mxu0 %v816
    %1394 = vmatpush1.bf16.msra.mxu0 %v815
    %1395 = vmatprep.subr.bf16.mxu0 %v822
    %1396 = vmatpush1.bf16.msra.mxu0 %v821
    %1397 = vmatprep.subr.bf16.mxu0 %v828
    %1398 = vmatpush1.bf16.msra.mxu0 %v827
    %1399 = vmatprep.subr.bf16.mxu0 %v834
    %1400 = vmatpush1.bf16.msra.mxu0 %v833
    %1401 = vmatprep.subr.bf16.mxu0 %v840
    %1402 = vmatpush1.bf16.msra.mxu0 %v839
    %1403 = vmatprep.subr.bf16.mxu0 %v846
    %1404 = vmatpush1.bf16.msra.mxu0 %v845
    %1405 = vmatprep.subr.bf16.mxu0 %v852
    %1406 = vmatpush1.bf16.msra.mxu0 %v851
    %1407 = vmatprep.subr.bf16.mxu0 %v858
    %1408 = vmatpush1.bf16.msra.mxu0 %v857
    %1409 = vmatprep.subr.bf16.mxu0 %v864
    %1410 = vmatpush1.bf16.msra.mxu0 %v863
    %1411 = vmatprep.subr.bf16.mxu0 %v870
    %1412 = vmatpush1.bf16.msra.mxu0 %v869
    %1413 = vmatprep.subr.bf16.mxu0 %v876
    %1414 = vmatpush1.bf16.msra.mxu0 %v875
    %1415 = vmatprep.subr.bf16.mxu0 %v882
    %1416 = vmatpush1.bf16.msra.mxu0 %v881
    %1417 = vmatprep.mubr.bf16.mxu0 %v1298
    %1418 = vmatmul.mubr.bf16.gmra.mrb[0].mxu0 %v1297
    %v1419 = vpop.f32.mrb[0].mxu0
    %v1420 = vadd.f32 %v488, %v1419
    %v1421 = vpop.f32.mrb[0].mxu0
    %v1422 = vadd.f32 %v492, %v1421
    %v1423 = vpop.f32.mrb[0].mxu0
    %v1424 = vadd.f32 %v488, %v1423
    %v1425 = vpop.f32.mrb[0].mxu0
    %v1426 = vadd.f32 %v492, %v1425
    %1427 = vdwg.mxu0
    %s1428 = scalar_lea.vmem [#allocation5], 96
    %1429 = vst [vmem:[%s1428] sm:$0xff] %v1334
    %1430 = vst [vmem:[%s1428 + $0x8] sm:$0xff] %v1336
    %1431 = vst [vmem:[%s1428 + $0x10] sm:$0xff] %v1377
    %1432 = vst [vmem:[%s1428 + $0x18] sm:$0xff] %v1379
    %1433 = vst [vmem:[%s1428 + $0x20] sm:$0xff] %v1420
    %1434 = vst [vmem:[%s1428 + $0x28] sm:$0xff] %v1422
    %1435 = vst [vmem:[%s1428 + $0x30] sm:$0xff] %v1338
    %1436 = vst [vmem:[%s1428 + $0x38] sm:$0xff] %v1340
    %1437 = vst [vmem:[%s1428 + $0x40] sm:$0xff] %v1381
    %1438 = vst [vmem:[%s1428 + $0x48] sm:$0xff] %v1383
    %1439 = vst [vmem:[%s1428 + $0x50] sm:$0xff] %v1424
    %1440 = vst [vmem:[%s1428 + $0x58] sm:$0xff] %v1426
    %v1441 = vadd.f32 %v1334, %v1338
    %v1442 = vrot.slane %v1441, 4
    %v1443 = vadd.f32 %v1441, %v1442
    %v1444 = vrot.slane %v1443, 2
    %v1445 = vadd.f32 %v1443, %v1444
    %v1446 = vrot.slane %v1445, 1
    %v1447 = vadd.f32 %v1445, %v1446
    %v1448 = vadd.f32 %v1336, %v1340
    %v1449 = vrot.slane %v1448, 4
    %v1450 = vadd.f32 %v1448, %v1449
    %v1451 = vrot.slane %v1450, 2
    %v1452 = vadd.f32 %v1450, %v1451
    %v1453 = vrot.slane %v1452, 1
    %v1454 = vadd.f32 %v1452, %v1453
    %v1455 = vadd.f32 %v1377, %v1381
    %v1456 = vrot.slane %v1455, 4
    %v1457 = vadd.f32 %v1455, %v1456
    %v1458 = vrot.slane %v1457, 2
    %v1459 = vadd.f32 %v1457, %v1458
    %v1460 = vrot.slane %v1459, 1
    %v1461 = vadd.f32 %v1459, %v1460
    %v1462 = vadd.f32 %v1379, %v1383
    %v1463 = vrot.slane %v1462, 4
    %v1464 = vadd.f32 %v1462, %v1463
    %v1465 = vrot.slane %v1464, 2
    %v1466 = vadd.f32 %v1464, %v1465
    %v1467 = vrot.slane %v1466, 1
    %v1468 = vadd.f32 %v1466, %v1467
    %v1469 = vadd.f32 %v1420, %v1424
    %v1470 = vrot.slane %v1469, 4
    %v1471 = vadd.f32 %v1469, %v1470
    %v1472 = vrot.slane %v1471, 2
    %v1473 = vadd.f32 %v1471, %v1472
    %v1474 = vrot.slane %v1473, 1
    %v1475 = vadd.f32 %v1473, %v1474
    %v1476 = vadd.f32 %v1422, %v1426
    %v1477 = vrot.slane %v1476, 4
    %v1478 = vadd.f32 %v1476, %v1477
    %v1479 = vrot.slane %v1478, 2
    %v1480 = vadd.f32 %v1478, %v1479
    %v1481 = vrot.slane %v1480, 1
    %v1482 = vadd.f32 %v1480, %v1481
    %v1483 = vmul.f32 %v1447, %v1162
    %v1484 = vmul.f32 %v1454, %v1162
    %v1485 = vmul.f32 %v1461, %v1162
    %v1486 = vmul.f32 %v1468, %v1162
    %v1487 = vmul.f32 %v1475, %v1162
    %v1488 = vmul.f32 %v1482, %v1162
    %vm1489 = vcmask 1040384
    %v1490 = vsel %vm1489, %v1163, %v1483
    %v1491 = vsel %vm1489, %v1164, %v1484
    %v1492 = vsel %vm1489, %v1165, %v1485
    %v1493 = vsel %vm1489, %v1166, %v1486
    %v1494 = vsel %vm1489, %v1167, %v1487
    %v1495 = vsel %vm1489, %v1168, %v1488
    %v1502 = vcombine.low %v1490, %v1491
    %v1503 = vcombine.low %v1492, %v1493
    %v1505 = vunpack.c.l.s4 1983009808
    %v1506 = vunpack.c.0.s8 %v1505
    %v1507 = vlaneseq
    %v1508 = vshrl.u32 %v1507, 7
    %v1509 = vsub.s32 %v1506, %v1508
    %v1510 = vrot.slane %v1502, %v1509
    %v1512 = vunpack.c.l.s4 1983009808
    %v1513 = vunpack.c.0.s8 %v1512
    %v1514 = vlaneseq
    %v1515 = vshrl.u32 %v1514, 7
    %v1516 = vsub.s32 %v1513, %v1515
    %v1517 = vrot.slane %v1503, %v1516
    %v1518 = vcombine.low %v1510, %v1517
    %v1519 = vcombine.low %v1494, %v1495
    %v1521 = vunpack.c.l.s4 1983009808
    %v1522 = vunpack.c.0.s8 %v1521
    %v1523 = vlaneseq
    %v1524 = vshrl.u32 %v1523, 7
    %v1525 = vsub.s32 %v1522, %v1524
    %v1526 = vrot.slane %v1519, %v1525
    %1529 = vst [vmem:[#allocation6] sm:$0xff] %v1518
    %1530 = vst [vmem:[#allocation6 + $0x8] sm:$0xf] %v1526
    // Predicated region
    $region26: #{tpu_custom_call.1} parent=1 // pred_check
      _
    $region27: #{tpu_custom_call.1} parent=1 // pred_check_branch
      %1532 = sbr.rel (0) target = $region29
    $region28: #{tpu_custom_call.1} parent=1 // pred_region
      %s1534 = ssub.s32 3072, 3072
      %1535 = vsyncadd [#allocation4], %s1534
      %s1536 = sshll.u32 [#allocation5], 4
      %s1537 = int_to_ptr.vmem [resolvable:$true] %s1536
      %1542 = dma.vmem_to_hbm [thread:$0]  %s1537, 3072, %s5, [#allocation4], 768, 768, 48
    $region29: #{tpu_custom_call.1} parent=1 // pred_fallthru
      _
    // Predicated region
    $region30: #{tpu_custom_call.1} parent=1 // pred_check
      _
    $region31: #{tpu_custom_call.1} parent=1 // pred_check_branch
      %1544 = sbr.rel (0) target = $region33
    $region32: #{tpu_custom_call.1} parent=1 // pred_region
      %s1546 = ssub.s32 192, 192
      %1547 = vsyncadd [#allocation7], %s1546
      %s1549 = sshll.u32 [#allocation6], 4
      %s1550 = int_to_ptr.vmem [resolvable:$true] %s1549
      %1552 = dma.vmem_to_hbm [thread:$0]  %s1550, 192, %s6, [#allocation7]
    $region33: #{tpu_custom_call.1} parent=1 // pred_fallthru
      _
    // Predicated region
    $region34: #{tpu_custom_call.1} parent=1 // pred_check
      _
    $region35: #{tpu_custom_call.1} parent=1 // pred_check_branch
      %1554 = sbr.rel (0) target = $region37
    $region36: #{tpu_custom_call.1} parent=1 // pred_region
      %1555 = dma.done [#allocation4], 3072
    $region37: #{tpu_custom_call.1} parent=1 // pred_fallthru
      _
    // Predicated region
    $region38: #{tpu_custom_call.1} parent=1 // pred_check
      _
    $region39: #{tpu_custom_call.1} parent=1 // pred_check_branch
      %1557 = sbr.rel (0) target = $region41
    $region40: #{tpu_custom_call.1} parent=1 // pred_region
      %1558 = dma.done [#allocation7], 192
    $region41: #{tpu_custom_call.1} parent=1 // pred_fallthru
      _
    %1559 = vsyncpa [#allocation3], 1
    %1560 = vsyncpa [#allocation4], 1
    %1561 = vsyncpa [#allocation7], 1

</llo_original>
